<compile_context>
chip_gen: v7x
topology: tpu7x:2x2x1
jax: 0.10.0
libtpu: 0.0.40
codegen_flags: <defaults>
</compile_context>

<pallas_src>
import functools

import jax
import jax.numpy as jnp
from jax.experimental import pallas as pl
from jax.experimental.pallas import tpu as pltpu


def geoconv_kernel(xyz_nc_ref, xyz_cn_ref, ptsT_ref,
                   wdT_ref, bd_ref, wcT_ref, w2T_ref, bn1b_ref, bout_ref,
                   out_ref, dirf_ref, *, radius, decay_radius, n, tn, mid):
    f32 = jnp.float32
    bf16 = jnp.bfloat16
    t = pl.program_id(1)

    # ---- direction features for ALL N neighbors (BN1 scale pre-folded).
    #      Computed once per batch element and cached in VMEM scratch; the tile
    #      axis is sequential ("arbitrary") so t==0 always runs first per b.
    @pl.when(t == 0)
    def _():
        d = jnp.dot(wdT_ref[...], ptsT_ref[0],
                    preferred_element_type=f32)                  # (6*mid, N)
        dirf_ref[...] = (d + bd_ref[...]).astype(bf16)

    # ---- center branch for this tile of center points (BN2 scale pre-folded) ----
    if tn == n:
        ptsT_tile = ptsT_ref[0]                                  # (Cin, N)
    else:
        col0 = pl.multiple_of(t * tn, tn)
        ptsT_tile = ptsT_ref[0, :, pl.ds(col0, tn)]              # (Cin, TN)
    centerT = jnp.dot(wcT_ref[...], ptsT_tile,
                      preferred_element_type=f32)                # (cout, TN)

    # ---- pairwise geometry: rows = neighbor m (full N), cols = center n (tile) ----
    xyz_n = xyz_nc_ref[0]                                        # (N, 3)  neighbors
    xyz_c = xyz_cn_ref[0]                                        # (3, TN) centers
    vx = xyz_n[:, 0:1] - xyz_c[0:1, :]                           # (N, TN)
    vy = xyz_n[:, 1:2] - xyz_c[1:2, :]
    vz = xyz_n[:, 2:3] - xyz_c[2:3, :]
    sqx = vx * vx
    sqy = vy * vy
    sqz = vz * vz
    norm2 = sqx + sqy + sqz

    # distance decay weight, normalized over neighbors (rows)
    w = jnp.maximum(
        1.0 - (norm2 - radius ** 2) / (decay_radius ** 2 - radius ** 2), 0.0)
    inv_sum = pl.reciprocal(jnp.sum(w, axis=0, keepdims=True), approx=True)
    # shared per-pair factor  w_norm / ||v||^2  (hoisted out of the axis loop)
    won2 = (w * inv_sum) * pl.reciprocal(norm2 + 1e-12, approx=True)

    # axis order [+z, -z, +y, -y, +x, -x];   relu(-v)^2 = v^2 - relu(v)^2
    aggT = jnp.zeros((mid, tn), dtype=f32)
    for a_pos, (v, sq) in zip((0, 2, 4), ((vz, sqz), (vy, sqy), (vx, sqx))):
        p = jnp.maximum(v, 0.0)
        coef_pos = (p * p) * won2                                # (N, TN)
        coef_neg = sq * won2 - coef_pos
        dpos = dirf_ref[a_pos * mid:(a_pos + 1) * mid, :]        # (mid, N) bf16
        dneg = dirf_ref[(a_pos + 1) * mid:(a_pos + 2) * mid, :]
        aggT = aggT + jnp.dot(dpos, coef_pos.astype(bf16),
                              preferred_element_type=f32)
        aggT = aggT + jnp.dot(dneg, coef_neg.astype(bf16),
                              preferred_element_type=f32)

    # ---- BN1 shift + ReLU, second linear, residual, fused bias, BN2 shift + ReLU ----
    h = jnp.maximum(aggT + bn1b_ref[...], 0.0)                   # (mid, TN)
    d2 = jnp.dot(w2T_ref[...], h.astype(bf16),
                 preferred_element_type=f32)                     # (cout, TN)
    out = jnp.maximum(centerT + d2 + bout_ref[...], 0.0)
    out_ref[0] = out.astype(out_ref.dtype)


def _pick_tile(n, max_pair_elems=1 << 19):
    """Largest center-tile width TN (multiple of 128 dividing N) such that the
    (N, TN) f32 temporaries stay comfortably inside scoped VMEM."""
    if n % 128 != 0:
        return n
    tn = 128
    cand = 128
    while cand <= n:
        if n % cand == 0 and n * cand <= max_pair_elems:
            tn = cand
        cand += 128
    return tn


def geoconv_forward(xyz, points, params, radius, decay_radius):
    B, N, Cin = points.shape
    cout = params["wc"].shape[-1]
    mid = params["w2"].shape[0]
    f32, bf16 = jnp.float32, jnp.bfloat16

    tn = _pick_tile(N)
    n_tiles = N // tn

    # ---- host-side layout changes + BN folding ----
    xyz_cn = jnp.transpose(xyz, (0, 2, 1))                       # (B, 3, N)
    ptsT = jnp.transpose(points, (0, 2, 1)).astype(bf16)         # (B, Cin, N)

    bn1s = params["bn1_scale"].reshape(mid)
    bn1b = params["bn1_shift"].reshape(mid, 1).astype(f32)
    bn2s = params["bn2_scale"].reshape(cout)
    bn2b = params["bn2_shift"].reshape(cout)

    # direction MLP: group columns per axis (row a*mid + d), fold BN1 scale
    wd_g = params["wd"].reshape(Cin, mid, 6) * bn1s.reshape(1, mid, 1)
    wdT_g = jnp.transpose(wd_g, (2, 1, 0)).reshape(6 * mid, Cin).astype(bf16)
    bd_g = (params["bd"].reshape(mid, 6) * bn1s.reshape(mid, 1)).T
    bd_g = bd_g.reshape(6 * mid, 1).astype(f32)

    # center / second linear: fold BN2 scale; fuse all output biases + BN2 shift
    wcT_s = (bn2s.reshape(cout, 1) * params["wc"].T).astype(bf16)   # (cout, Cin)
    w2T_s = (bn2s.reshape(cout, 1) * params["w2"].T).astype(bf16)   # (cout, mid)
    bout = (bn2s * (params["bc"].reshape(cout) + params["b2"].reshape(cout))
            + bn2b).reshape(cout, 1).astype(f32)

    kernel = functools.partial(
        geoconv_kernel, radius=radius, decay_radius=decay_radius,
        n=N, tn=tn, mid=mid)

    grid_spec = pltpu.PrefetchScalarGridSpec(
        num_scalar_prefetch=0,
        grid=(B, n_tiles),
        in_specs=[
            pl.BlockSpec((1, N, 3), lambda b, t: (b, 0, 0)),       # xyz (neighbors)
            pl.BlockSpec((1, 3, tn), lambda b, t: (b, 0, t)),      # xyz^T (centers)
            pl.BlockSpec((1, Cin, N), lambda b, t: (b, 0, 0)),     # points^T (full)
            pl.BlockSpec((6 * mid, Cin), lambda b, t: (0, 0)),     # W_dir^T (folded)
            pl.BlockSpec((6 * mid, 1), lambda b, t: (0, 0)),       # b_dir   (folded)
            pl.BlockSpec((cout, Cin), lambda b, t: (0, 0)),        # W_center^T (folded)
            pl.BlockSpec((cout, mid), lambda b, t: (0, 0)),        # W_dir2^T (folded)
            pl.BlockSpec((mid, 1), lambda b, t: (0, 0)),           # BN1 shift
            pl.BlockSpec((cout, 1), lambda b, t: (0, 0)),          # fused output bias
        ],
        out_specs=pl.BlockSpec((1, cout, tn), lambda b, t: (b, 0, t)),
        scratch_shapes=[pltpu.VMEM((6 * mid, N), bf16)],           # cached dirf^T
    )

    outT = pl.pallas_call(
        kernel,
        out_shape=jax.ShapeDtypeStruct((B, cout, N), f32),
        grid_spec=grid_spec,
        compiler_params=pltpu.CompilerParams(
            # tile axis must stay sequential: the dirf scratch is filled at t == 0
            dimension_semantics=("parallel", "arbitrary"),
            vmem_limit_bytes=48 * 1024 * 1024,
        ),
    )(xyz, xyz_cn, ptsT, wdT_g, bd_g, wcT_s, w2T_s, bn1b, bout)

    return jnp.transpose(outT, (0, 2, 1))                         # (B, N, cout)


def geoconv_reference(xyz, points, params, radius, decay_radius):
    """Pure-JAX reference, mathematically identical to the PyTorch forward."""
    B, N, Cin = points.shape
    pts = points.reshape(B * N, Cin)
    center = pts @ params["wc"] + params["bc"][0]
    dirf = pts @ params["wd"] + params["bd"]
    mid = params["w2"].shape[0]
    dirf = dirf.reshape(B, N, mid, 6)

    v = xyz[:, None, :, :] - xyz[:, :, None, :]          # v[b,n,m] = xyz[m]-xyz[n]
    norm2 = jnp.sum(v * v, axis=-1)
    norm = jnp.sqrt(norm2)
    axes = jnp.array([[0, 0, 1], [0, 0, -1], [0, 1, 0],
                      [0, -1, 0], [1, 0, 0], [-1, 0, 0]], jnp.float32).T  # (3,6)
    dots = jnp.einsum("bnmc,ca->bnma", v, axes)
    cos = jnp.maximum(dots, 0.0) / (norm[..., None] + 1e-8)
    cos2 = cos * cos
    w = jnp.maximum(1.0 - (norm2 - radius ** 2) / (decay_radius ** 2 - radius ** 2), 0.0)
    w = w / jnp.sum(w, axis=-1, keepdims=True)
    coef = cos2 * w[..., None]                            # (B,N,N,6)
    agg = jnp.einsum("bnma,bmda->bnd", coef, dirf)        # (B,N,mid)

    h = agg.reshape(B * N, mid) * params["bn1_scale"][0] + params["bn1_shift"][0]
    h = jnp.maximum(h, 0.0)
    d2 = h @ params["w2"] + params["b2"][0]
    out = center + d2
    out = out * params["bn2_scale"][0] + params["bn2_shift"][0]
    out = jnp.maximum(out, 0.0)
    return out.reshape(B, N, -1)


def make_params(key, in_channel, out_channel, mid_channel):
    ks = jax.random.split(key, 12)
    f32 = jnp.float32
    wc = jax.random.normal(ks[0], (in_channel, out_channel), f32) / jnp.sqrt(in_channel)
    bc = jax.random.normal(ks[1], (1, out_channel), f32) * 0.01
    wd = jax.random.normal(ks[2], (in_channel, mid_channel * 6), f32) / jnp.sqrt(in_channel)
    bd = jax.random.normal(ks[3], (mid_channel * 6,), f32) * 0.01
    w2 = jax.random.normal(ks[4], (mid_channel, out_channel), f32) / jnp.sqrt(mid_channel)
    b2 = jax.random.normal(ks[5], (1, out_channel), f32) * 0.01

    def bn(kg, kb, km, kv, c):
        gamma = jax.random.uniform(kg, (c,), f32, 0.5, 1.5)
        beta = jax.random.normal(kb, (c,), f32) * 0.1
        rmean = jax.random.normal(km, (c,), f32) * 0.1
        rvar = jax.random.uniform(kv, (c,), f32, 0.5, 1.5)
        scale = gamma / jnp.sqrt(rvar + 1e-5)
        shift = beta - rmean * scale
        return scale.reshape(1, c), shift.reshape(1, c)

    bn1_scale, bn1_shift = bn(ks[6], ks[7], ks[8], ks[9], mid_channel)
    bn2_scale, bn2_shift = bn(ks[10], ks[11], ks[6], ks[7], out_channel)

    return dict(wc=wc, bc=bc, wd=wd, bd=bd, w2=w2, b2=b2,
                bn1_scale=bn1_scale, bn1_shift=bn1_shift,
                bn2_scale=bn2_scale, bn2_shift=bn2_shift)


if __name__ == "__main__":
    B, N = 2, 128
    in_channel, out_channel, mid_channel = 16, 32, 16
    radius, decay_radius = 0.4, 0.9

    key = jax.random.PRNGKey(0)
    k_xyz, k_pts, k_par = jax.random.split(key, 3)
    xyz = jax.random.normal(k_xyz, (B, N, 3), jnp.float32) * 0.3
    points = jax.random.normal(k_pts, (B, N, in_channel), jnp.float32)
    params = make_params(k_par, in_channel, out_channel, mid_channel)

    out = geoconv_forward(xyz, points, params, radius, decay_radius)
    out = jax.block_until_ready(out)

    ref = geoconv_reference(xyz, points, params, radius, decay_radius)
    ref = jax.block_until_ready(ref)

    max_err = float(jnp.max(jnp.abs(out - ref)))
    ref_scale = float(jnp.max(jnp.abs(ref)))
    assert out.shape == (B, N, out_channel), out.shape
    # bf16 matmul operands + approx reciprocals => compare with a relative bound
    assert max_err <= 2e-2 * max(ref_scale, 1.0), (
        f"max abs error too large: {max_err} (ref scale {ref_scale})")
    print("KERNEL_OK")
</pallas_src>

<mosaic_0001>
module attributes {stable_mosaic.version = 11 : i64} {
  func.func @geoconv_kernel(%arg0: i32, %arg1: i32, %arg2: memref<1x128x3xf32, #tpu.memory_space<vmem>>, %arg3: memref<1x3x128xf32, #tpu.memory_space<vmem>>, %arg4: memref<1x16x128xbf16, #tpu.memory_space<vmem>>, %arg5: memref<96x16xbf16, #tpu.memory_space<vmem>>, %arg6: memref<96x1xf32, #tpu.memory_space<vmem>>, %arg7: memref<32x16xbf16, #tpu.memory_space<vmem>>, %arg8: memref<32x16xbf16, #tpu.memory_space<vmem>>, %arg9: memref<16x1xf32, #tpu.memory_space<vmem>>, %arg10: memref<32x1xf32, #tpu.memory_space<vmem>>, %arg11: memref<1x32x128xf32, #tpu.memory_space<vmem>>, %arg12: memref<96x128xbf16, #tpu.memory_space<vmem>>) attributes {dimension_semantics = [#tpu.dimension_semantics<parallel>, #tpu.dimension_semantics<arbitrary>], iteration_bounds = array<i64: 2, 1>, scalar_prefetch = 0 : i64, scratch_operands = 1 : i64, tpu.core_type = #tpu.core_type<tc>, window_params = [{transform_indices = @transform_0, window_bounds = array<i64: 1, 128, 3>}, {transform_indices = @transform_1, window_bounds = array<i64: 1, 3, 128>}, {transform_indices = @transform_2, window_bounds = array<i64: 1, 16, 128>}, {pipeline_mode = #tpu.pipeline_mode<synchronous>, transform_indices = @transform_3, window_bounds = array<i64: 96, 16>}, {pipeline_mode = #tpu.pipeline_mode<synchronous>, transform_indices = @transform_4, window_bounds = array<i64: 96, 1>}, {pipeline_mode = #tpu.pipeline_mode<synchronous>, transform_indices = @transform_5, window_bounds = array<i64: 32, 16>}, {pipeline_mode = #tpu.pipeline_mode<synchronous>, transform_indices = @transform_6, window_bounds = array<i64: 32, 16>}, {pipeline_mode = #tpu.pipeline_mode<synchronous>, transform_indices = @transform_7, window_bounds = array<i64: 16, 1>}, {pipeline_mode = #tpu.pipeline_mode<synchronous>, transform_indices = @transform_8, window_bounds = array<i64: 32, 1>}, {transform_indices = @transform_9, window_bounds = array<i64: 1, 32, 128>}]} {
    %c0_i32 = arith.constant 0 : i32
    %0 = arith.cmpi eq, %arg1, %c0_i32 : i32
    %1 = arith.extui %0 : i1 to i32
    %c0_i32_0 = arith.constant 0 : i32
    %2 = arith.cmpi ne, %1, %c0_i32_0 : i32
    scf.if %2 {
      %c0_46 = arith.constant 0 : index
      %c0_47 = arith.constant 0 : index
      %108 = vector.load %arg5[%c0_46, %c0_47] : memref<96x16xbf16, #tpu.memory_space<vmem>>, vector<96x16xbf16>
      %c0_48 = arith.constant 0 : index
      %c0_49 = arith.constant 0 : index
      %c0_50 = arith.constant 0 : index
      %109 = vector.load %arg4[%c0_48, %c0_49, %c0_50] : memref<1x16x128xbf16, #tpu.memory_space<vmem>>, vector<1x16x128xbf16>
      %110 = vector.shape_cast %109 : vector<1x16x128xbf16> to vector<16x128xbf16>
      %cst_51 = arith.constant dense<0.000000e+00> : vector<96x128xf32>
      %111 = tpu.matmul %108, %110, %cst_51 {dimension_numbers = #tpu.dot_dimension_numbers<[1], [0], [0], [1], [0, 0, 1, 1], [], []>} : vector<96x16xbf16>, vector<16x128xbf16>, vector<96x128xf32> -> vector<96x128xf32>
      %c0_52 = arith.constant 0 : index
      %c0_53 = arith.constant 0 : index
      %112 = vector.load %arg6[%c0_52, %c0_53] : memref<96x1xf32, #tpu.memory_space<vmem>>, vector<96x1xf32>
      %113 = vector.broadcast %112 : vector<96x1xf32> to vector<96x128xf32>
      %114 = arith.addf %111, %113 : vector<96x128xf32>
      %115 = arith.truncf %114 : vector<96x128xf32> to vector<96x128xbf16>
      %c0_54 = arith.constant 0 : index
      %c0_55 = arith.constant 0 : index
      %116 = vector.load %arg12[%c0_54, %c0_55] : memref<96x128xbf16, #tpu.memory_space<vmem>>, vector<96x128xbf16>
      tpu.vector_store %arg12[%c0_54, %c0_55], %115 {strides = array<i32>} : memref<96x128xbf16, #tpu.memory_space<vmem>>, vector<96x128xbf16>,
    } else {
    }
    %c0 = arith.constant 0 : index
    %c0_1 = arith.constant 0 : index
    %c0_2 = arith.constant 0 : index
    %3 = vector.load %arg4[%c0, %c0_1, %c0_2] : memref<1x16x128xbf16, #tpu.memory_space<vmem>>, vector<1x16x128xbf16>
    %4 = vector.shape_cast %3 : vector<1x16x128xbf16> to vector<16x128xbf16>
    %c0_3 = arith.constant 0 : index
    %c0_4 = arith.constant 0 : index
    %5 = vector.load %arg7[%c0_3, %c0_4] : memref<32x16xbf16, #tpu.memory_space<vmem>>, vector<32x16xbf16>
    %cst = arith.constant dense<0.000000e+00> : vector<32x128xf32>
    %6 = tpu.matmul %5, %4, %cst {dimension_numbers = #tpu.dot_dimension_numbers<[1], [0], [0], [1], [0, 0, 1, 1], [], []>} : vector<32x16xbf16>, vector<16x128xbf16>, vector<32x128xf32> -> vector<32x128xf32>
    %c0_5 = arith.constant 0 : index
    %c0_6 = arith.constant 0 : index
    %c0_7 = arith.constant 0 : index
    %7 = vector.load %arg2[%c0_5, %c0_6, %c0_7] : memref<1x128x3xf32, #tpu.memory_space<vmem>>, vector<1x128x3xf32>
    %8 = vector.shape_cast %7 : vector<1x128x3xf32> to vector<128x3xf32>
    %c0_8 = arith.constant 0 : index
    %c0_9 = arith.constant 0 : index
    %c0_10 = arith.constant 0 : index
    %9 = vector.load %arg3[%c0_8, %c0_9, %c0_10] : memref<1x3x128xf32, #tpu.memory_space<vmem>>, vector<1x3x128xf32>
    %10 = vector.shape_cast %9 : vector<1x3x128xf32> to vector<3x128xf32>
    %11 = vector.extract_strided_slice %8 {offsets = [0, 0], sizes = [128, 1], strides = [1, 1]} : vector<128x3xf32> to vector<128x1xf32>
    %12 = vector.extract_strided_slice %10 {offsets = [0, 0], sizes = [1, 128], strides = [1, 1]} : vector<3x128xf32> to vector<1x128xf32>
    %13 = vector.broadcast %11 : vector<128x1xf32> to vector<128x128xf32>
    %14 = vector.broadcast %12 : vector<1x128xf32> to vector<128x128xf32>
    %15 = arith.subf %13, %14 : vector<128x128xf32>
    %16 = vector.extract_strided_slice %8 {offsets = [0, 1], sizes = [128, 1], strides = [1, 1]} : vector<128x3xf32> to vector<128x1xf32>
    %17 = vector.extract_strided_slice %10 {offsets = [1, 0], sizes = [1, 128], strides = [1, 1]} : vector<3x128xf32> to vector<1x128xf32>
    %18 = vector.broadcast %16 : vector<128x1xf32> to vector<128x128xf32>
    %19 = vector.broadcast %17 : vector<1x128xf32> to vector<128x128xf32>
    %20 = arith.subf %18, %19 : vector<128x128xf32>
    %21 = vector.extract_strided_slice %8 {offsets = [0, 2], sizes = [128, 1], strides = [1, 1]} : vector<128x3xf32> to vector<128x1xf32>
    %22 = vector.extract_strided_slice %10 {offsets = [2, 0], sizes = [1, 128], strides = [1, 1]} : vector<3x128xf32> to vector<1x128xf32>
    %23 = vector.broadcast %21 : vector<128x1xf32> to vector<128x128xf32>
    %24 = vector.broadcast %22 : vector<1x128xf32> to vector<128x128xf32>
    %25 = arith.subf %23, %24 : vector<128x128xf32>
    %26 = arith.mulf %15, %15 : vector<128x128xf32>
    %27 = arith.mulf %20, %20 : vector<128x128xf32>
    %28 = arith.mulf %25, %25 : vector<128x128xf32>
    %29 = arith.addf %26, %27 : vector<128x128xf32>
    %30 = arith.addf %29, %28 : vector<128x128xf32>
    %cst_11 = arith.constant 1.600000e-01 : f32
    %31 = vector.broadcast %cst_11 : f32 to vector<128x128xf32>
    %32 = arith.subf %30, %31 : vector<128x128xf32>
    %cst_12 = arith.constant 6.500000e-01 : f32
    %33 = vector.broadcast %cst_12 : f32 to vector<128x128xf32>
    %34 = arith.divf %32, %33 : vector<128x128xf32>
    %cst_13 = arith.constant 1.000000e+00 : f32
    %35 = vector.broadcast %cst_13 : f32 to vector<128x128xf32>
    %36 = arith.subf %35, %34 : vector<128x128xf32>
    %cst_14 = arith.constant 0.000000e+00 : f32
    %37 = vector.broadcast %cst_14 : f32 to vector<128x128xf32>
    %38 = arith.maximumf %36, %37 : vector<128x128xf32>
    %cst_15 = arith.constant dense<0.000000e+00> : vector<128xf32>
    %39 = vector.multi_reduction <add>, %38, %cst_15 [0] : vector<128x128xf32> to vector<128xf32>
    %40 = vector.shape_cast %39 : vector<128xf32> to vector<1x128xf32>
    %41 = tpu.reciprocal %40 {approx = true} : vector<1x128xf32> -> vector<1x128xf32>
    %42 = vector.broadcast %41 : vector<1x128xf32> to vector<128x128xf32>
    %43 = arith.mulf %38, %42 : vector<128x128xf32>
    %cst_16 = arith.constant 9.99999996E-13 : f32
    %44 = vector.broadcast %cst_16 : f32 to vector<128x128xf32>
    %45 = arith.addf %30, %44 : vector<128x128xf32>
    %46 = tpu.reciprocal %45 {approx = true} : vector<128x128xf32> -> vector<128x128xf32>
    %47 = arith.mulf %43, %46 : vector<128x128xf32>
    %cst_17 = arith.constant 0.000000e+00 : f32
    %48 = vector.broadcast %cst_17 : f32 to vector<16x128xf32>
    %cst_18 = arith.constant 0.000000e+00 : f32
    %49 = vector.broadcast %cst_18 : f32 to vector<128x128xf32>
    %50 = arith.maximumf %25, %49 : vector<128x128xf32>
    %51 = arith.mulf %50, %50 : vector<128x128xf32>
    %52 = arith.mulf %51, %47 : vector<128x128xf32>
    %53 = arith.mulf %28, %47 : vector<128x128xf32>
    %54 = arith.subf %53, %52 : vector<128x128xf32>
    %c0_19 = arith.constant 0 : index
    %c0_20 = arith.constant 0 : index
    %55 = vector.load %arg12[%c0_19, %c0_20] : memref<96x128xbf16, #tpu.memory_space<vmem>>, vector<16x128xbf16>
    %c16 = arith.constant 16 : index
    %c0_21 = arith.constant 0 : index
    %56 = vector.load %arg12[%c16, %c0_21] : memref<96x128xbf16, #tpu.memory_space<vmem>>, vector<16x128xbf16>
    %57 = arith.truncf %52 : vector<128x128xf32> to vector<128x128xbf16>
    %cst_22 = arith.constant dense<0.000000e+00> : vector<16x128xf32>
    %58 = tpu.matmul %55, %57, %cst_22 {dimension_numbers = #tpu.dot_dimension_numbers<[1], [0], [0], [1], [0, 0, 1, 1], [], []>} : vector<16x128xbf16>, vector<128x128xbf16>, vector<16x128xf32> -> vector<16x128xf32>
    %59 = arith.addf %48, %58 : vector<16x128xf32>
    %60 = arith.truncf %54 : vector<128x128xf32> to vector<128x128xbf16>
    %cst_23 = arith.constant dense<0.000000e+00> : vector<16x128xf32>
    %61 = tpu.matmul %56, %60, %cst_23 {dimension_numbers = #tpu.dot_dimension_numbers<[1], [0], [0], [1], [0, 0, 1, 1], [], []>} : vector<16x128xbf16>, vector<128x128xbf16>, vector<16x128xf32> -> vector<16x128xf32>
    %62 = arith.addf %59, %61 : vector<16x128xf32>
    %cst_24 = arith.constant 0.000000e+00 : f32
    %63 = vector.broadcast %cst_24 : f32 to vector<128x128xf32>
    %64 = arith.maximumf %20, %63 : vector<128x128xf32>
    %65 = arith.mulf %64, %64 : vector<128x128xf32>
    %66 = arith.mulf %65, %47 : vector<128x128xf32>
    %67 = arith.mulf %27, %47 : vector<128x128xf32>
    %68 = arith.subf %67, %66 : vector<128x128xf32>
    %c32 = arith.constant 32 : index
    %c0_25 = arith.constant 0 : index
    %69 = vector.load %arg12[%c32, %c0_25] : memref<96x128xbf16, #tpu.memory_space<vmem>>, vector<16x128xbf16>
    %c48 = arith.constant 48 : index
    %c0_26 = arith.constant 0 : index
    %70 = vector.load %arg12[%c48, %c0_26] : memref<96x128xbf16, #tpu.memory_space<vmem>>, vector<16x128xbf16>
    %71 = arith.truncf %66 : vector<128x128xf32> to vector<128x128xbf16>
    %cst_27 = arith.constant dense<0.000000e+00> : vector<16x128xf32>
    %72 = tpu.matmul %69, %71, %cst_27 {dimension_numbers = #tpu.dot_dimension_numbers<[1], [0], [0], [1], [0, 0, 1, 1], [], []>} : vector<16x128xbf16>, vector<128x128xbf16>, vector<16x128xf32> -> vector<16x128xf32>
    %73 = arith.addf %62, %72 : vector<16x128xf32>
    %74 = arith.truncf %68 : vector<128x128xf32> to vector<128x128xbf16>
    %cst_28 = arith.constant dense<0.000000e+00> : vector<16x128xf32>
    %75 = tpu.matmul %70, %74, %cst_28 {dimension_numbers = #tpu.dot_dimension_numbers<[1], [0], [0], [1], [0, 0, 1, 1], [], []>} : vector<16x128xbf16>, vector<128x128xbf16>, vector<16x128xf32> -> vector<16x128xf32>
    %76 = arith.addf %73, %75 : vector<16x128xf32>
    %cst_29 = arith.constant 0.000000e+00 : f32
    %77 = vector.broadcast %cst_29 : f32 to vector<128x128xf32>
    %78 = arith.maximumf %15, %77 : vector<128x128xf32>
    %79 = arith.mulf %78, %78 : vector<128x128xf32>
    %80 = arith.mulf %79, %47 : vector<128x128xf32>
    %81 = arith.mulf %26, %47 : vector<128x128xf32>
    %82 = arith.subf %81, %80 : vector<128x128xf32>
    %c64 = arith.constant 64 : index
    %c0_30 = arith.constant 0 : index
    %83 = vector.load %arg12[%c64, %c0_30] : memref<96x128xbf16, #tpu.memory_space<vmem>>, vector<16x128xbf16>
    %c80 = arith.constant 80 : index
    %c0_31 = arith.constant 0 : index
    %84 = vector.load %arg12[%c80, %c0_31] : memref<96x128xbf16, #tpu.memory_space<vmem>>, vector<16x128xbf16>
    %85 = arith.truncf %80 : vector<128x128xf32> to vector<128x128xbf16>
    %cst_32 = arith.constant dense<0.000000e+00> : vector<16x128xf32>
    %86 = tpu.matmul %83, %85, %cst_32 {dimension_numbers = #tpu.dot_dimension_numbers<[1], [0], [0], [1], [0, 0, 1, 1], [], []>} : vector<16x128xbf16>, vector<128x128xbf16>, vector<16x128xf32> -> vector<16x128xf32>
    %87 = arith.addf %76, %86 : vector<16x128xf32>
    %88 = arith.truncf %82 : vector<128x128xf32> to vector<128x128xbf16>
    %cst_33 = arith.constant dense<0.000000e+00> : vector<16x128xf32>
    %89 = tpu.matmul %84, %88, %cst_33 {dimension_numbers = #tpu.dot_dimension_numbers<[1], [0], [0], [1], [0, 0, 1, 1], [], []>} : vector<16x128xbf16>, vector<128x128xbf16>, vector<16x128xf32> -> vector<16x128xf32>
    %90 = arith.addf %87, %89 : vector<16x128xf32>
    %c0_34 = arith.constant 0 : index
    %c0_35 = arith.constant 0 : index
    %91 = vector.load %arg9[%c0_34, %c0_35] : memref<16x1xf32, #tpu.memory_space<vmem>>, vector<16x1xf32>
    %92 = vector.broadcast %91 : vector<16x1xf32> to vector<16x128xf32>
    %93 = arith.addf %90, %92 : vector<16x128xf32>
    %cst_36 = arith.constant 0.000000e+00 : f32
    %94 = vector.broadcast %cst_36 : f32 to vector<16x128xf32>
    %95 = arith.maximumf %93, %94 : vector<16x128xf32>
    %c0_37 = arith.constant 0 : index
    %c0_38 = arith.constant 0 : index
    %96 = vector.load %arg8[%c0_37, %c0_38] : memref<32x16xbf16, #tpu.memory_space<vmem>>, vector<32x16xbf16>
    %97 = arith.truncf %95 : vector<16x128xf32> to vector<16x128xbf16>
    %cst_39 = arith.constant dense<0.000000e+00> : vector<32x128xf32>
    %98 = tpu.matmul %96, %97, %cst_39 {dimension_numbers = #tpu.dot_dimension_numbers<[1], [0], [0], [1], [0, 0, 1, 1], [], []>} : vector<32x16xbf16>, vector<16x128xbf16>, vector<32x128xf32> -> vector<32x128xf32>
    %99 = arith.addf %6, %98 : vector<32x128xf32>
    %c0_40 = arith.constant 0 : index
    %c0_41 = arith.constant 0 : index
    %100 = vector.load %arg10[%c0_40, %c0_41] : memref<32x1xf32, #tpu.memory_space<vmem>>, vector<32x1xf32>
    %101 = vector.broadcast %100 : vector<32x1xf32> to vector<32x128xf32>
    %102 = arith.addf %99, %101 : vector<32x128xf32>
    %cst_42 = arith.constant 0.000000e+00 : f32
    %103 = vector.broadcast %cst_42 : f32 to vector<32x128xf32>
    %104 = arith.maximumf %102, %103 : vector<32x128xf32>
    %c0_43 = arith.constant 0 : index
    %c0_44 = arith.constant 0 : index
    %c0_45 = arith.constant 0 : index
    %105 = vector.load %arg11[%c0_43, %c0_44, %c0_45] : memref<1x32x128xf32, #tpu.memory_space<vmem>>, vector<1x32x128xf32>
    %106 = vector.shape_cast %105 : vector<1x32x128xf32> to vector<32x128xf32>
    %107 = vector.shape_cast %104 : vector<32x128xf32> to vector<1x32x128xf32>
    tpu.vector_store %arg11[%c0_43, %c0_44, %c0_45], %107 {strides = array<i32>} : memref<1x32x128xf32, #tpu.memory_space<vmem>>, vector<1x32x128xf32>,
    return
  }
  func.func @transform_0(%arg0: i32, %arg1: i32) -> (i32, i32, i32) {
    %c0_i32 = arith.constant 0 : i32
    %c0_i32_0 = arith.constant 0 : i32
    %c0_i32_1 = arith.constant 0 : i32
    return %arg0, %c0_i32, %c0_i32_0 : i32, i32, i32
  }
  func.func @transform_1(%arg0: i32, %arg1: i32) -> (i32, i32, i32) {
    %c0_i32 = arith.constant 0 : i32
    %c0_i32_0 = arith.constant 0 : i32
    return %arg0, %c0_i32, %arg1 : i32, i32, i32
  }
  func.func @transform_2(%arg0: i32, %arg1: i32) -> (i32, i32, i32) {
    %c0_i32 = arith.constant 0 : i32
    %c0_i32_0 = arith.constant 0 : i32
    %c0_i32_1 = arith.constant 0 : i32
    return %arg0, %c0_i32, %c0_i32_0 : i32, i32, i32
  }
  func.func @transform_3(%arg0: i32, %arg1: i32) -> (i32, i32) {
    %c0_i32 = arith.constant 0 : i32
    %c0_i32_0 = arith.constant 0 : i32
    %c0_i32_1 = arith.constant 0 : i32
    return %c0_i32, %c0_i32_0 : i32, i32
  }
  func.func @transform_4(%arg0: i32, %arg1: i32) -> (i32, i32) {
    %c0_i32 = arith.constant 0 : i32
    %c0_i32_0 = arith.constant 0 : i32
    %c0_i32_1 = arith.constant 0 : i32
    return %c0_i32, %c0_i32_0 : i32, i32
  }
  func.func @transform_5(%arg0: i32, %arg1: i32) -> (i32, i32) {
    %c0_i32 = arith.constant 0 : i32
    %c0_i32_0 = arith.constant 0 : i32
    %c0_i32_1 = arith.constant 0 : i32
    return %c0_i32, %c0_i32_0 : i32, i32
  }
  func.func @transform_6(%arg0: i32, %arg1: i32) -> (i32, i32) {
    %c0_i32 = arith.constant 0 : i32
    %c0_i32_0 = arith.constant 0 : i32
    %c0_i32_1 = arith.constant 0 : i32
    return %c0_i32, %c0_i32_0 : i32, i32
  }
  func.func @transform_7(%arg0: i32, %arg1: i32) -> (i32, i32) {
    %c0_i32 = arith.constant 0 : i32
    %c0_i32_0 = arith.constant 0 : i32
    %c0_i32_1 = arith.constant 0 : i32
    return %c0_i32, %c0_i32_0 : i32, i32
  }
  func.func @transform_8(%arg0: i32, %arg1: i32) -> (i32, i32) {
    %c0_i32 = arith.constant 0 : i32
    %c0_i32_0 = arith.constant 0 : i32
    %c0_i32_1 = arith.constant 0 : i32
    return %c0_i32, %c0_i32_0 : i32, i32
  }
  func.func @transform_9(%arg0: i32, %arg1: i32) -> (i32, i32, i32) {
    %c0_i32 = arith.constant 0 : i32
    %c0_i32_0 = arith.constant 0 : i32
    return %arg0, %c0_i32, %arg1 : i32, i32, i32
  }
}

</mosaic_0001>

<llo_original>
// kernel: tpu_custom_call.1
$region0: #{tpu_custom_call.1}
  #allocation0 [shape = 'u32[]', space=smem, size = 0x4, offset = 0x4, fixed_abs, tag = 'smem constant byte address 0x4 - core index']
  #allocation1 [shape = 'u32[144,128]{1,0:T(1,128)}', space=vmem, size = 0x12000, scoped, tag = 'internal scratch']
  #allocation2 [shape = 'bf16[96,128]{1,0:T(16,128)(2,1)}', space=vmem, size = 0x6000, scoped, tag = 'scratch operand']
  %s0 = inlined_call_operand.vmem [shape: f32[2,128,3], index: 0, kind: input, shape index: {}]
  %s1 = inlined_call_operand.vmem [shape: f32[2,3,128], index: 1, kind: input, shape index: {}]
  %s2 = inlined_call_operand.vmem [shape: bf16[2,16,128], index: 2, kind: input, shape index: {}]
  %s3 = inlined_call_operand.vmem [shape: bf16[96,16], index: 3, kind: input, shape index: {}]
  %s4 = inlined_call_operand.vmem [shape: f32[96,1], index: 4, kind: input, shape index: {}]
  %s5 = inlined_call_operand.vmem [shape: bf16[32,16], index: 5, kind: input, shape index: {}]
  %s6 = inlined_call_operand.vmem [shape: bf16[32,16], index: 6, kind: input, shape index: {}]
  %s7 = inlined_call_operand.vmem [shape: f32[16,1], index: 7, kind: input, shape index: {}]
  %s8 = inlined_call_operand.vmem [shape: f32[32,1], index: 8, kind: input, shape index: {}]
  %s9 = inlined_call_operand.hbm [shape: f32[2,32,128], index: 9, kind: output, shape index: {}]
  %s10 = sld [smem:[#allocation0]]
  $region73: #{tpu_custom_call.1} parent=0
    _
  %s12 = ssub.s32 1, %s10
  %s13 = scalar_select 0, %s12, %s10
  $region1: #{tpu_custom_call.1} parent=0
    #allocation3 [shape = 'u8[32768]{0}', space=vmem, size = 0x8000, scoped, tag = 'output window, operand 0']
    #allocation4 [shape = 's32[2]{0}', space=sflag, size = 0x8, scoped, tag = 'scoped memory for tpu_custom_call.1']
    %14 = vsyncpa [#allocation4], 0
    %s15 = scalar_lea.sflag [#allocation4], 1
    %16 = vsyncpa %s15, 0
    loop: start=0, step=1, limit=4
    $region2: #{tpu_custom_call.1} parent=1 // loop_pre_header
      _
    $region3: #{tpu_custom_call.1} parent=1 // loop_header
      %s18 = sphi 0, %s22
      %p19 = scmp.ge.s32.totalorder %s18, 4
      %s25 = sphi 0, %s37
      %s26 = sphi 0, %s33
      %s27 = sphi 0, %s25
      %s28 = sphi 0, %s26
      %s29 = sphi 0, %s27
      %s30 = sphi 0, %s28
      %s40 = sphi 0, %s42
      %s43 = sphi 0, %s40
      %s44 = sphi 0, %s43
      %s60 = sphi 0, %s44
      %s68 = sphi 0, %s70
      %s71 = sphi 0, %s68
      %s72 = sphi 0, %s71
      %s88 = sphi 0, %s72
      %s94 = sphi 0, %s96
      %s97 = sphi 0, %s94
      %s98 = sphi 0, %s97
      %s114 = sphi 0, %s98
      %s118 = sphi 0, %s118
      %s120 = sphi 0, %s118
      %s121 = sphi 0, %s120
      %s135 = sphi 0, %s121
      %s139 = sphi 0, %s139
      %s141 = sphi 0, %s139
      %s142 = sphi 0, %s141
      %s156 = sphi 0, %s142
      %s160 = sphi 0, %s160
      %s162 = sphi 0, %s160
      %s163 = sphi 0, %s162
      %s177 = sphi 0, %s163
      %s181 = sphi 0, %s181
      %s183 = sphi 0, %s181
      %s184 = sphi 0, %s183
      %s198 = sphi 0, %s184
      %s202 = sphi 0, %s202
      %s204 = sphi 0, %s202
      %s205 = sphi 0, %s204
      %s219 = sphi 0, %s205
      %s223 = sphi 0, %s223
      %s225 = sphi 0, %s223
      %s226 = sphi 0, %s225
      %s240 = sphi 0, %s226
      %s248 = sphi 0, %s250
      %s251 = sphi 0, %s248
      %s252 = sphi 0, %s251
      %s268 = sphi 0, %s252
    $region4: #{tpu_custom_call.1} parent=1 // loop_header_branch
      %21 = sbr.rel (%p19) target = $region8
    $region5: #{tpu_custom_call.1} parent=1 // loop_body
      %s23 = ssub.s32 %s18, 1
      %s24 = ssub.s32 %s18, 2
      %s31 = sadd.s32 1, %s26
      %p32 = scmp.ge.s32.totalorder %s31, 1
      %s33 = scalar_select %p32, 0, %s31
      %s34 = sadd.s32 1, %s25
      %s35 = scalar_select %p32, %s34, %s25
      %p36 = scmp.ge.s32.totalorder %s35, 2
      %s37 = scalar_select %p36, 0, %s35
      %s38 = ssub.s32 %s25, %s37
      %p39 = scmp.eq.s32.totalorder %s38, 0
      %s41 = sadd.s32 %s40, 1
      %s42 = scalar_select %p39, %s40, %s41
      %p45 = pneg %p39
      %p46 = scmp.eq.s32.totalorder %s18, 1
      %p47 = por %p45, %p46
      %p48 = scmp.ne.s32.totalorder %s40, %s43
      %p49 = scmp.eq.s32.totalorder %s18, 0
      %p50 = por %p48, %p49
      %p51 = scmp.ne.s32.totalorder %s40, %s43
      %p52 = scmp.eq.s32.totalorder %s23, 1
      %p53 = por %p51, %p52
      %p54 = scmp.ne.s32.totalorder %s43, %s44
      %p55 = scmp.eq.s32.totalorder %s23, 0
      %p56 = por %p54, %p55
      %p57 = scmp.ne.s32.totalorder %s43, %s44
      %p58 = scmp.eq.s32.totalorder %s24, 1
      %p59 = por %p57, %p58
      %p61 = scmp.ne.s32.totalorder %s44, %s60
      %p62 = scmp.eq.s32.totalorder %s24, 0
      %p63 = por %p61, %p62
      %s64 = ssub.s32 %s25, %s37
      %s65 = ssub.s32 %s26, %s33
      %s66 = sor.u32 %s64, %s65
      %p67 = scmp.eq.s32.totalorder %s66, 0
      %s69 = sadd.s32 %s68, 1
      %s70 = scalar_select %p67, %s68, %s69
      %p73 = pneg %p67
      %p74 = scmp.eq.s32.totalorder %s18, 1
      %p75 = por %p73, %p74
      %p76 = scmp.ne.s32.totalorder %s68, %s71
      %p77 = scmp.eq.s32.totalorder %s18, 0
      %p78 = por %p76, %p77
      %p79 = scmp.ne.s32.totalorder %s68, %s71
      %p80 = scmp.eq.s32.totalorder %s23, 1
      %p81 = por %p79, %p80
      %p82 = scmp.ne.s32.totalorder %s71, %s72
      %p83 = scmp.eq.s32.totalorder %s23, 0
      %p84 = por %p82, %p83
      %p85 = scmp.ne.s32.totalorder %s71, %s72
      %p86 = scmp.eq.s32.totalorder %s24, 1
      %p87 = por %p85, %p86
      %p89 = scmp.ne.s32.totalorder %s72, %s88
      %p90 = scmp.eq.s32.totalorder %s24, 0
      %p91 = por %p89, %p90
      %s92 = ssub.s32 %s25, %s37
      %p93 = scmp.eq.s32.totalorder %s92, 0
      %s95 = sadd.s32 %s94, 1
      %s96 = scalar_select %p93, %s94, %s95
      %p99 = pneg %p93
      %p100 = scmp.eq.s32.totalorder %s18, 1
      %p101 = por %p99, %p100
      %p102 = scmp.ne.s32.totalorder %s94, %s97
      %p103 = scmp.eq.s32.totalorder %s18, 0
      %p104 = por %p102, %p103
      %p105 = scmp.ne.s32.totalorder %s94, %s97
      %p106 = scmp.eq.s32.totalorder %s23, 1
      %p107 = por %p105, %p106
      %p108 = scmp.ne.s32.totalorder %s97, %s98
      %p109 = scmp.eq.s32.totalorder %s23, 0
      %p110 = por %p108, %p109
      %p111 = scmp.ne.s32.totalorder %s97, %s98
      %p112 = scmp.eq.s32.totalorder %s24, 1
      %p113 = por %p111, %p112
      %p115 = scmp.ne.s32.totalorder %s98, %s114
      %p116 = scmp.eq.s32.totalorder %s24, 0
      %p117 = por %p115, %p116
      %s119 = sadd.s32 %s118, 1
      %p122 = scmp.eq.s32.totalorder %s18, 1
      %p123 = scmp.ne.s32.totalorder %s118, %s120
      %p124 = scmp.eq.s32.totalorder %s18, 0
      %p125 = por %p123, %p124
      %p126 = scmp.ne.s32.totalorder %s118, %s120
      %p127 = scmp.eq.s32.totalorder %s23, 1
      %p128 = por %p126, %p127
      %p129 = scmp.ne.s32.totalorder %s120, %s121
      %p130 = scmp.eq.s32.totalorder %s23, 0
      %p131 = por %p129, %p130
      %p132 = scmp.ne.s32.totalorder %s120, %s121
      %p133 = scmp.eq.s32.totalorder %s24, 1
      %p134 = por %p132, %p133
      %p136 = scmp.ne.s32.totalorder %s121, %s135
      %p137 = scmp.eq.s32.totalorder %s24, 0
      %p138 = por %p136, %p137
      %s140 = sadd.s32 %s139, 1
      %p143 = scmp.eq.s32.totalorder %s18, 1
      %p144 = scmp.ne.s32.totalorder %s139, %s141
      %p145 = scmp.eq.s32.totalorder %s18, 0
      %p146 = por %p144, %p145
      %p147 = scmp.ne.s32.totalorder %s139, %s141
      %p148 = scmp.eq.s32.totalorder %s23, 1
      %p149 = por %p147, %p148
      %p150 = scmp.ne.s32.totalorder %s141, %s142
      %p151 = scmp.eq.s32.totalorder %s23, 0
      %p152 = por %p150, %p151
      %p153 = scmp.ne.s32.totalorder %s141, %s142
      %p154 = scmp.eq.s32.totalorder %s24, 1
      %p155 = por %p153, %p154
      %p157 = scmp.ne.s32.totalorder %s142, %s156
      %p158 = scmp.eq.s32.totalorder %s24, 0
      %p159 = por %p157, %p158
      %s161 = sadd.s32 %s160, 1
      %p164 = scmp.eq.s32.totalorder %s18, 1
      %p165 = scmp.ne.s32.totalorder %s160, %s162
      %p166 = scmp.eq.s32.totalorder %s18, 0
      %p167 = por %p165, %p166
      %p168 = scmp.ne.s32.totalorder %s160, %s162
      %p169 = scmp.eq.s32.totalorder %s23, 1
      %p170 = por %p168, %p169
      %p171 = scmp.ne.s32.totalorder %s162, %s163
      %p172 = scmp.eq.s32.totalorder %s23, 0
      %p173 = por %p171, %p172
      %p174 = scmp.ne.s32.totalorder %s162, %s163
      %p175 = scmp.eq.s32.totalorder %s24, 1
      %p176 = por %p174, %p175
      %p178 = scmp.ne.s32.totalorder %s163, %s177
      %p179 = scmp.eq.s32.totalorder %s24, 0
      %p180 = por %p178, %p179
      %s182 = sadd.s32 %s181, 1
      %p185 = scmp.eq.s32.totalorder %s18, 1
      %p186 = scmp.ne.s32.totalorder %s181, %s183
      %p187 = scmp.eq.s32.totalorder %s18, 0
      %p188 = por %p186, %p187
      %p189 = scmp.ne.s32.totalorder %s181, %s183
      %p190 = scmp.eq.s32.totalorder %s23, 1
      %p191 = por %p189, %p190
      %p192 = scmp.ne.s32.totalorder %s183, %s184
      %p193 = scmp.eq.s32.totalorder %s23, 0
      %p194 = por %p192, %p193
      %p195 = scmp.ne.s32.totalorder %s183, %s184
      %p196 = scmp.eq.s32.totalorder %s24, 1
      %p197 = por %p195, %p196
      %p199 = scmp.ne.s32.totalorder %s184, %s198
      %p200 = scmp.eq.s32.totalorder %s24, 0
      %p201 = por %p199, %p200
      %s203 = sadd.s32 %s202, 1
      %p206 = scmp.eq.s32.totalorder %s18, 1
      %p207 = scmp.ne.s32.totalorder %s202, %s204
      %p208 = scmp.eq.s32.totalorder %s18, 0
      %p209 = por %p207, %p208
      %p210 = scmp.ne.s32.totalorder %s202, %s204
      %p211 = scmp.eq.s32.totalorder %s23, 1
      %p212 = por %p210, %p211
      %p213 = scmp.ne.s32.totalorder %s204, %s205
      %p214 = scmp.eq.s32.totalorder %s23, 0
      %p215 = por %p213, %p214
      %p216 = scmp.ne.s32.totalorder %s204, %s205
      %p217 = scmp.eq.s32.totalorder %s24, 1
      %p218 = por %p216, %p217
      %p220 = scmp.ne.s32.totalorder %s205, %s219
      %p221 = scmp.eq.s32.totalorder %s24, 0
      %p222 = por %p220, %p221
      %s224 = sadd.s32 %s223, 1
      %p227 = scmp.eq.s32.totalorder %s18, 1
      %p228 = scmp.ne.s32.totalorder %s223, %s225
      %p229 = scmp.eq.s32.totalorder %s18, 0
      %p230 = por %p228, %p229
      %p231 = scmp.ne.s32.totalorder %s223, %s225
      %p232 = scmp.eq.s32.totalorder %s23, 1
      %p233 = por %p231, %p232
      %p234 = scmp.ne.s32.totalorder %s225, %s226
      %p235 = scmp.eq.s32.totalorder %s23, 0
      %p236 = por %p234, %p235
      %p237 = scmp.ne.s32.totalorder %s225, %s226
      %p238 = scmp.eq.s32.totalorder %s24, 1
      %p239 = por %p237, %p238
      %p241 = scmp.ne.s32.totalorder %s226, %s240
      %p242 = scmp.eq.s32.totalorder %s24, 0
      %p243 = por %p241, %p242
      %s244 = ssub.s32 %s25, %s37
      %s245 = ssub.s32 %s26, %s33
      %s246 = sor.u32 %s244, %s245
      %p247 = scmp.eq.s32.totalorder %s246, 0
      %s249 = sadd.s32 %s248, 1
      %s250 = scalar_select %p247, %s248, %s249
      %p253 = pneg %p247
      %p254 = scmp.eq.s32.totalorder %s18, 1
      %p255 = por %p253, %p254
      %p256 = scmp.ne.s32.totalorder %s248, %s251
      %p257 = scmp.eq.s32.totalorder %s18, 0
      %p258 = por %p256, %p257
      %p259 = scmp.ne.s32.totalorder %s248, %s251
      %p260 = scmp.eq.s32.totalorder %s23, 1
      %p261 = por %p259, %p260
      %p262 = scmp.ne.s32.totalorder %s251, %s252
      %p263 = scmp.eq.s32.totalorder %s23, 0
      %p264 = por %p262, %p263
      %p265 = scmp.ne.s32.totalorder %s251, %s252
      %p266 = scmp.eq.s32.totalorder %s24, 1
      %p267 = por %p265, %p266
      %p269 = scmp.ne.s32.totalorder %s252, %s268
      %p270 = scmp.eq.s32.totalorder %s24, 0
      %p271 = por %p269, %p270
      %p272 = scmp.le.s32.totalorder 1, %s18
      %p273 = scmp.lt.s32.totalorder %s18, 3
      %p274 = pnand %p272, %p273
      %p275 = pneg %p274
      // Predicated region
      $region9: #{tpu_custom_call.1} parent=5 // pred_check
        _
      $region10: #{tpu_custom_call.1} parent=5 // pred_check_branch
        %277 = sbr.rel (%p274) target = $region12
      $region11: #{tpu_custom_call.1} parent=5 // pred_region
        %s278 = ssub.s32 %s18, 1
        // Predicated region
        $region13: #{tpu_custom_call.1} parent=11 // pred_check
          %p279 = pneg %p131
        $region14: #{tpu_custom_call.1} parent=11 // pred_check_branch
          %281 = sbr.rel (%p279) target = $region16
        $region15: #{tpu_custom_call.1} parent=11 // pred_region
          _
        $region16: #{tpu_custom_call.1} parent=11 // pred_fallthru
          _
        // Predicated region
        $region17: #{tpu_custom_call.1} parent=11 // pred_check
          %p282 = pneg %p152
        $region18: #{tpu_custom_call.1} parent=11 // pred_check_branch
          %284 = sbr.rel (%p282) target = $region20
        $region19: #{tpu_custom_call.1} parent=11 // pred_region
          _
        $region20: #{tpu_custom_call.1} parent=11 // pred_fallthru
          _
        // Predicated region
        $region21: #{tpu_custom_call.1} parent=11 // pred_check
          %p285 = pneg %p173
        $region22: #{tpu_custom_call.1} parent=11 // pred_check_branch
          %287 = sbr.rel (%p285) target = $region24
        $region23: #{tpu_custom_call.1} parent=11 // pred_region
          _
        $region24: #{tpu_custom_call.1} parent=11 // pred_fallthru
          _
        // Predicated region
        $region25: #{tpu_custom_call.1} parent=11 // pred_check
          %p288 = pneg %p194
        $region26: #{tpu_custom_call.1} parent=11 // pred_check_branch
          %290 = sbr.rel (%p288) target = $region28
        $region27: #{tpu_custom_call.1} parent=11 // pred_region
          _
        $region28: #{tpu_custom_call.1} parent=11 // pred_fallthru
          _
        // Predicated region
        $region29: #{tpu_custom_call.1} parent=11 // pred_check
          %p291 = pneg %p215
        $region30: #{tpu_custom_call.1} parent=11 // pred_check_branch
          %293 = sbr.rel (%p291) target = $region32
        $region31: #{tpu_custom_call.1} parent=11 // pred_region
          _
        $region32: #{tpu_custom_call.1} parent=11 // pred_fallthru
          _
        // Predicated region
        $region33: #{tpu_custom_call.1} parent=11 // pred_check
          %p294 = pneg %p236
        $region34: #{tpu_custom_call.1} parent=11 // pred_check_branch
          %296 = sbr.rel (%p294) target = $region36
        $region35: #{tpu_custom_call.1} parent=11 // pred_region
          _
        $region36: #{tpu_custom_call.1} parent=11 // pred_fallthru
          _
      $region12: #{tpu_custom_call.1} parent=5 // pred_fallthru
        _
      %p297 = scmp.lt.s32.totalorder %s18, 2
      // Predicated region
      $region37: #{tpu_custom_call.1} parent=5 // pred_check
        %p298 = pneg %p297
      $region38: #{tpu_custom_call.1} parent=5 // pred_check_branch
        %300 = sbr.rel (%p298) target = $region40
      $region39: #{tpu_custom_call.1} parent=5 // pred_region
        // Predicated region
        $region41: #{tpu_custom_call.1} parent=39 // pred_check
          %p301 = pneg %p50
        $region42: #{tpu_custom_call.1} parent=39 // pred_check_branch
          %303 = sbr.rel (%p301) target = $region44
        $region43: #{tpu_custom_call.1} parent=39 // pred_region
          %p304 = scmp.lt.s32.totalorder %s25, 1
          %s305 = scalar_select %p304, %s25, 1
          %s306 = smul.addr %s305, 16
          %s307 = smul.addr %s306, 8
          %s308 = scalar_lea.vmem %s0, %s307
        $region44: #{tpu_custom_call.1} parent=39 // pred_fallthru
          _
        // Predicated region
        $region45: #{tpu_custom_call.1} parent=39 // pred_check
          %p309 = pneg %p78
        $region46: #{tpu_custom_call.1} parent=39 // pred_check_branch
          %311 = sbr.rel (%p309) target = $region48
        $region47: #{tpu_custom_call.1} parent=39 // pred_region
          %p312 = scmp.lt.s32.totalorder %s25, 1
          %s313 = scalar_select %p312, %s25, 1
          %p314 = scmp.lt.s32.totalorder %s26, 0
          %s315 = scalar_select %p314, %s26, 0
          %s316 = sadd.s32 %s315, %s313
          %s317 = smul.addr %s316, 4
          %s318 = scalar_lea.vmem %s1, %s317
        $region48: #{tpu_custom_call.1} parent=39 // pred_fallthru
          _
        // Predicated region
        $region49: #{tpu_custom_call.1} parent=39 // pred_check
          %p319 = pneg %p104
        $region50: #{tpu_custom_call.1} parent=39 // pred_check_branch
          %321 = sbr.rel (%p319) target = $region52
        $region51: #{tpu_custom_call.1} parent=39 // pred_region
          %p322 = scmp.lt.s32.totalorder %s25, 1
          %s323 = scalar_select %p322, %s25, 1
          %s324 = smul.addr %s323, 2
          %s325 = smul.addr %s324, 4
          %s326 = scalar_lea.vmem %s2, %s325
        $region52: #{tpu_custom_call.1} parent=39 // pred_fallthru
          _
      $region40: #{tpu_custom_call.1} parent=5 // pred_fallthru
        _
      %p327 = scmp.le.s32.totalorder 1, %s18
      %p328 = scmp.lt.s32.totalorder %s18, 3
      %p329 = pnand %p327, %p328
      %p330 = pneg %p329
      // Predicated region
      $region53: #{tpu_custom_call.1} parent=5 // pred_check
        _
      $region54: #{tpu_custom_call.1} parent=5 // pred_check_branch
        %332 = sbr.rel (%p329) target = $region56
      $region55: #{tpu_custom_call.1} parent=5 // pred_region
        %s333 = ssub.s32 %s18, 1
        %p334 = scmp.lt.s32.totalorder %s27, 1
        %s335 = scalar_select %p334, %s27, 1
        %s336 = smul.addr %s335, 16
        %s337 = smul.addr %s336, 8
        %s338 = scalar_lea.vmem %s0, %s337
        %p339 = pneg %p56
        %p340 = pneg %p53
        %p341 = scmp.lt.s32.totalorder %s27, 1
        %s342 = scalar_select %p341, %s27, 1
        %p343 = scmp.lt.s32.totalorder %s28, 0
        %s344 = scalar_select %p343, %s28, 0
        %s345 = sadd.s32 %s344, %s342
        %s346 = smul.addr %s345, 4
        %s347 = scalar_lea.vmem %s1, %s346
        %p348 = pneg %p84
        %p349 = pneg %p81
        %p350 = scmp.lt.s32.totalorder %s27, 1
        %s351 = scalar_select %p350, %s27, 1
        %s352 = smul.addr %s351, 2
        %s353 = smul.addr %s352, 4
        %s354 = scalar_lea.vmem %s2, %s353
        %p355 = pneg %p110
        %p356 = pneg %p107
        %p357 = pneg %p131
        %p358 = pneg %p128
        %p359 = pneg %p152
        %p360 = pneg %p149
        %p361 = pneg %p173
        %p362 = pneg %p170
        %p363 = pneg %p194
        %p364 = pneg %p191
        %p365 = pneg %p215
        %p366 = pneg %p212
        %p367 = pneg %p236
        %p368 = pneg %p233
        %p369 = pneg %p264
        %p370 = pneg %p261
        %s371 = sand.u32 %s251, 1
        %s372 = scalar_lea.sflag [#allocation4], %s371
        %s373 = sand.u32 %s251, 1
        %s374 = smul.addr %s373, 32
        %s375 = scalar_lea.vmem [#allocation3], %s374
        %p376 = scmp.lt.s32.totalorder %s27, 1
        %s377 = scalar_select %p376, %s27, 1
        %s378 = smul.addr %s377, 16
        %s379 = smul.addr %s378, 8
        %s380 = scalar_lea.vmem %s0, %s379
        %p381 = scmp.lt.s32.totalorder %s27, 1
        %s382 = scalar_select %p381, %s27, 1
        %p383 = scmp.lt.s32.totalorder %s28, 0
        %s384 = scalar_select %p383, %s28, 0
        %s385 = sadd.s32 %s384, %s382
        %s386 = smul.addr %s385, 4
        %s387 = scalar_lea.vmem %s1, %s386
        %p388 = scmp.lt.s32.totalorder %s27, 1
        %s389 = scalar_select %p388, %s27, 1
        %s390 = smul.addr %s389, 2
        %s391 = smul.addr %s390, 4
        %s392 = scalar_lea.vmem %s2, %s391
        %p394 = scmp.eq.s32.totalorder %s28, 0
        // Predicated region
        $region57: #{tpu_custom_call.1} parent=55 // pred_check
          %p395 = pneg %p394
        $region58: #{tpu_custom_call.1} parent=55 // pred_check_branch
          %397 = sbr.rel (%p395) target = $region60
        $region59: #{tpu_custom_call.1} parent=55 // pred_region
          %v398 = vld [vmem:[%s3] sm:$0xf]
          %v399 = vld [vmem:[%s3 + $0x4] sm:$0xf]
          %v400 = vld [vmem:[%s3 + $0x8] sm:$0xf]
          %v401 = vld [vmem:[%s3 + $0xc] sm:$0xf]
          %v402 = vld [vmem:[%s3 + $0x10] sm:$0xf]
          %v403 = vld [vmem:[%s3 + $0x14] sm:$0xf]
          %v404 = vld [vmem:[%s3 + $0x18] sm:$0xf]
          %v405 = vld [vmem:[%s3 + $0x1c] sm:$0xf]
          %v406 = vld [vmem:[%s3 + $0x20] sm:$0xf]
          %v407 = vld [vmem:[%s3 + $0x24] sm:$0xf]
          %v408 = vld [vmem:[%s3 + $0x28] sm:$0xf]
          %v409 = vld [vmem:[%s3 + $0x2c] sm:$0xf]
          %v410 = vld [vmem:[%s392] sm:$0xf]
          %v411 = vld [vmem:[%s392 + $0x4] sm:$0xf]
          %v412 = vld [vmem:[%s4] sm:$0xff]
          %v413 = vld [vmem:[%s4 + $0x8] sm:$0xff]
          %v414 = vld [vmem:[%s4 + $0x10] sm:$0xff]
          %v415 = vld [vmem:[%s4 + $0x18] sm:$0xff]
          %v416 = vld [vmem:[%s4 + $0x20] sm:$0xff]
          %v417 = vld [vmem:[%s4 + $0x28] sm:$0xff]
          %v418 = vld [vmem:[%s4 + $0x30] sm:$0xff]
          %v419 = vld [vmem:[%s4 + $0x38] sm:$0xff]
          %v420 = vld [vmem:[%s4 + $0x40] sm:$0xff]
          %v421 = vld [vmem:[%s4 + $0x48] sm:$0xff]
          %v422 = vld [vmem:[%s4 + $0x50] sm:$0xff]
          %v423 = vld [vmem:[%s4 + $0x58] sm:$0xff]
          %425 = vset.pattern.permute.xlu0 0
          %426 = vperm.xlu0 %425, %v412
          %v427 = vpop.permute.xlu0 %426
          %430 = vset.pattern.permute.xlu0 0
          %431 = vperm.xlu0 %430, %v413
          %v432 = vpop.permute.xlu0 %431
          %435 = vset.pattern.permute.xlu0 0
          %436 = vperm.xlu0 %435, %v414
          %v437 = vpop.permute.xlu0 %436
          %440 = vset.pattern.permute.xlu0 0
          %441 = vperm.xlu0 %440, %v415
          %v442 = vpop.permute.xlu0 %441
          %445 = vset.pattern.permute.xlu0 0
          %446 = vperm.xlu0 %445, %v416
          %v447 = vpop.permute.xlu0 %446
          %450 = vset.pattern.permute.xlu0 0
          %451 = vperm.xlu0 %450, %v417
          %v452 = vpop.permute.xlu0 %451
          %455 = vset.pattern.permute.xlu0 0
          %456 = vperm.xlu0 %455, %v418
          %v457 = vpop.permute.xlu0 %456
          %460 = vset.pattern.permute.xlu0 0
          %461 = vperm.xlu0 %460, %v419
          %v462 = vpop.permute.xlu0 %461
          %465 = vset.pattern.permute.xlu0 0
          %466 = vperm.xlu0 %465, %v420
          %v467 = vpop.permute.xlu0 %466
          %470 = vset.pattern.permute.xlu0 0
          %471 = vperm.xlu0 %470, %v421
          %v472 = vpop.permute.xlu0 %471
          %475 = vset.pattern.permute.xlu0 0
          %476 = vperm.xlu0 %475, %v422
          %v477 = vpop.permute.xlu0 %476
          %480 = vset.pattern.permute.xlu0 0
          %481 = vperm.xlu0 %480, %v423
          %v482 = vpop.permute.xlu0 %481
          %v496 = vunpack.c.l.b16 %v398
          %v497 = vunpack.c.l.b16 %v399
          %v498 = vunpack.c.l.b16 %v400
          %v499 = vunpack.c.l.b16 %v401
          %v500 = vunpack.c.l.b16 %v402
          %v501 = vunpack.c.l.b16 %v403
          %v502 = vunpack.c.l.b16 %v404
          %v503 = vunpack.c.l.b16 %v405
          %v504 = vunpack.c.l.b16 %v406
          %v505 = vunpack.c.l.b16 %v407
          %v506 = vunpack.c.l.b16 %v408
          %v507 = vunpack.c.l.b16 %v409
          %v508 = vpack.c.b16 %v497, %v496
          %v509 = vpack.c.b16 %v499, %v498
          %v510 = vpack.c.b16 %v501, %v500
          %v511 = vpack.c.b16 %v503, %v502
          %v512 = vpack.c.b16 %v505, %v504
          %v513 = vpack.c.b16 %v507, %v506
          %v516 = vunpack.c.l.b16 %v410
          %v517 = vunpack.c.l.b16 %v411
          %v518 = vpack.c.b16 %v517, %v516
          %vm520 = vcmask 130048
          %v522 = vsel %vm520, %v508, 0
          %v525 = vsel %vm520, %v509, 0
          %v528 = vsel %vm520, %v510, 0
          %v531 = vsel %vm520, %v511, 0
          %v534 = vsel %vm520, %v512, 0
          %v537 = vsel %vm520, %v513, 0
          %539 = vmatprep.subr.bf16.mxu0 0
          %540 = vmatpush1.bf16.msra.mxu0 %v518
          %541 = vmatprep.subr.bf16.mxu0 0
          %542 = vmatpush1.bf16.msra.mxu0 0
          %543 = vmatprep.subr.bf16.mxu0 0
          %544 = vmatpush1.bf16.msra.mxu0 0
          %545 = vmatprep.subr.bf16.mxu0 0
          %546 = vmatpush1.bf16.msra.mxu0 0
          %547 = vmatprep.subr.bf16.mxu0 0
          %548 = vmatpush1.bf16.msra.mxu0 0
          %549 = vmatprep.subr.bf16.mxu0 0
          %550 = vmatpush1.bf16.msra.mxu0 0
          %551 = vmatprep.subr.bf16.mxu0 0
          %552 = vmatpush1.bf16.msra.mxu0 0
          %553 = vmatprep.subr.bf16.mxu0 0
          %554 = vmatpush1.bf16.msra.mxu0 0
          %555 = vmatprep.subr.bf16.mxu0 0
          %556 = vmatpush1.bf16.msra.mxu0 0
          %557 = vmatprep.subr.bf16.mxu0 0
          %558 = vmatpush1.bf16.msra.mxu0 0
          %559 = vmatprep.subr.bf16.mxu0 0
          %560 = vmatpush1.bf16.msra.mxu0 0
          %561 = vmatprep.subr.bf16.mxu0 0
          %562 = vmatpush1.bf16.msra.mxu0 0
          %563 = vmatprep.subr.bf16.mxu0 0
          %564 = vmatpush1.bf16.msra.mxu0 0
          %565 = vmatprep.subr.bf16.mxu0 0
          %566 = vmatpush1.bf16.msra.mxu0 0
          %567 = vmatprep.subr.bf16.mxu0 0
          %568 = vmatpush1.bf16.msra.mxu0 0
          %569 = vmatprep.subr.bf16.mxu0 0
          %570 = vmatpush1.bf16.msra.mxu0 0
          %571 = vmatprep.mubr.bf16.mxu0 0
          %572 = vmatmul.mubr.bf16.gmra.mrb[0].mxu0 %v522
          %v573 = vpop.f32.mrb[0].mxu0
          %v574 = vadd.f32 %v427, %v573
          %v575 = vpop.f32.mrb[0].mxu0
          %v576 = vpop.f32.mrb[0].mxu0
          %v577 = vadd.f32 %v432, %v576
          %v578 = vpop.f32.mrb[0].mxu0
          %579 = vmatprep.mubr.bf16.mxu0 0
          %580 = vmatmul.mubr.bf16.gmra.mrb[0].mxu0 %v525
          %v581 = vpop.f32.mrb[0].mxu0
          %v582 = vadd.f32 %v437, %v581
          %v583 = vpop.f32.mrb[0].mxu0
          %v584 = vpop.f32.mrb[0].mxu0
          %v585 = vadd.f32 %v442, %v584
          %v586 = vpop.f32.mrb[0].mxu0
          %587 = vmatprep.mubr.bf16.mxu0 0
          %588 = vmatmul.mubr.bf16.gmra.mrb[0].mxu0 %v528
          %v589 = vpop.f32.mrb[0].mxu0
          %v590 = vadd.f32 %v447, %v589
          %v591 = vpop.f32.mrb[0].mxu0
          %v592 = vpop.f32.mrb[0].mxu0
          %v593 = vadd.f32 %v452, %v592
          %v594 = vpop.f32.mrb[0].mxu0
          %595 = vmatprep.mubr.bf16.mxu0 0
          %596 = vmatmul.mubr.bf16.gmra.mrb[0].mxu0 %v531
          %v597 = vpop.f32.mrb[0].mxu0
          %v598 = vadd.f32 %v457, %v597
          %v599 = vpop.f32.mrb[0].mxu0
          %v600 = vpop.f32.mrb[0].mxu0
          %v601 = vadd.f32 %v462, %v600
          %v602 = vpop.f32.mrb[0].mxu0
          %603 = vmatprep.mubr.bf16.mxu0 0
          %604 = vmatmul.mubr.bf16.gmra.mrb[0].mxu0 %v534
          %v605 = vpop.f32.mrb[0].mxu0
          %v606 = vadd.f32 %v467, %v605
          %v607 = vpop.f32.mrb[0].mxu0
          %v608 = vpop.f32.mrb[0].mxu0
          %v609 = vadd.f32 %v472, %v608
          %v610 = vpop.f32.mrb[0].mxu0
          %611 = vmatprep.mubr.bf16.mxu0 0
          %612 = vmatmul.mubr.bf16.gmra.mrb[0].mxu0 %v537
          %v613 = vpop.f32.mrb[0].mxu0
          %v614 = vadd.f32 %v477, %v613
          %v615 = vpop.f32.mrb[0].mxu0
          %v616 = vpop.f32.mrb[0].mxu0
          %v617 = vadd.f32 %v482, %v616
          %v618 = vpop.f32.mrb[0].mxu0
          %619 = vdwg.mxu0
          %v620 = vpack.c.bf16 %v577, %v574
          %v621 = vpack.c.bf16 %v585, %v582
          %v622 = vpack.c.bf16 %v593, %v590
          %v623 = vpack.c.bf16 %v601, %v598
          %v624 = vpack.c.bf16 %v609, %v606
          %v625 = vpack.c.bf16 %v617, %v614
          %626 = vst [vmem:[#allocation2] sm:$0xff] %v620
          %627 = vst [vmem:[#allocation2 + $0x8] sm:$0xff] %v621
          %628 = vst [vmem:[#allocation2 + $0x10] sm:$0xff] %v622
          %629 = vst [vmem:[#allocation2 + $0x18] sm:$0xff] %v623
          %630 = vst [vmem:[#allocation2 + $0x20] sm:$0xff] %v624
          %631 = vst [vmem:[#allocation2 + $0x28] sm:$0xff] %v625
        $region60: #{tpu_custom_call.1} parent=55 // pred_fallthru
          _
        %v632 = vld [vmem:[%s392] sm:$0xf]
        %v633 = vld [vmem:[%s392 + $0x4] sm:$0xf]
        %v634 = vld [vmem:[%s5] sm:$0xf]
        %v635 = vld [vmem:[%s5 + $0x4] sm:$0xf]
        %v636 = vld [vmem:[%s5 + $0x8] sm:$0xf]
        %v637 = vld [vmem:[%s5 + $0xc] sm:$0xf]
        %v638 = vld [vmem:[%s380] sm:$0xff]
        %v639 = vld [vmem:[%s380 + $0x8] sm:$0xff]
        %v640 = vld [vmem:[%s380 + $0x10] sm:$0xff]
        %v641 = vld [vmem:[%s380 + $0x18] sm:$0xff]
        %v642 = vld [vmem:[%s380 + $0x20] sm:$0xff]
        %v643 = vld [vmem:[%s380 + $0x28] sm:$0xff]
        %v644 = vld [vmem:[%s380 + $0x30] sm:$0xff]
        %v645 = vld [vmem:[%s380 + $0x38] sm:$0xff]
        %v646 = vld [vmem:[%s380 + $0x40] sm:$0xff]
        %v647 = vld [vmem:[%s380 + $0x48] sm:$0xff]
        %v648 = vld [vmem:[%s380 + $0x50] sm:$0xff]
        %v649 = vld [vmem:[%s380 + $0x58] sm:$0xff]
        %v650 = vld [vmem:[%s380 + $0x60] sm:$0xff]
        %v651 = vld [vmem:[%s380 + $0x68] sm:$0xff]
        %v652 = vld [vmem:[%s380 + $0x70] sm:$0xff]
        %v653 = vld [vmem:[%s380 + $0x78] sm:$0xff]
        %v654 = vld [vmem:[%s387] sm:$0x7]
        %656 = vset.pattern.permute.xlu0 0
        %657 = vperm.xlu0 %656, %v638
        %v658 = vpop.permute.xlu0 %657
        %661 = vset.pattern.permute.xlu0 0
        %662 = vperm.xlu0 %661, %v639
        %v663 = vpop.permute.xlu0 %662
        %666 = vset.pattern.permute.xlu0 0
        %667 = vperm.xlu0 %666, %v640
        %v668 = vpop.permute.xlu0 %667
        %671 = vset.pattern.permute.xlu0 0
        %672 = vperm.xlu0 %671, %v641
        %v673 = vpop.permute.xlu0 %672
        %676 = vset.pattern.permute.xlu0 0
        %677 = vperm.xlu0 %676, %v642
        %v678 = vpop.permute.xlu0 %677
        %681 = vset.pattern.permute.xlu0 0
        %682 = vperm.xlu0 %681, %v643
        %v683 = vpop.permute.xlu0 %682
        %686 = vset.pattern.permute.xlu0 0
        %687 = vperm.xlu0 %686, %v644
        %v688 = vpop.permute.xlu0 %687
        %691 = vset.pattern.permute.xlu0 0
        %692 = vperm.xlu0 %691, %v645
        %v693 = vpop.permute.xlu0 %692
        %696 = vset.pattern.permute.xlu0 0
        %697 = vperm.xlu0 %696, %v646
        %v698 = vpop.permute.xlu0 %697
        %701 = vset.pattern.permute.xlu0 0
        %702 = vperm.xlu0 %701, %v647
        %v703 = vpop.permute.xlu0 %702
        %706 = vset.pattern.permute.xlu0 0
        %707 = vperm.xlu0 %706, %v648
        %v708 = vpop.permute.xlu0 %707
        %711 = vset.pattern.permute.xlu0 0
        %712 = vperm.xlu0 %711, %v649
        %v713 = vpop.permute.xlu0 %712
        %716 = vset.pattern.permute.xlu0 0
        %717 = vperm.xlu0 %716, %v650
        %v718 = vpop.permute.xlu0 %717
        %721 = vset.pattern.permute.xlu0 0
        %722 = vperm.xlu0 %721, %v651
        %v723 = vpop.permute.xlu0 %722
        %726 = vset.pattern.permute.xlu0 0
        %727 = vperm.xlu0 %726, %v652
        %v728 = vpop.permute.xlu0 %727
        %731 = vset.pattern.permute.xlu0 0
        %732 = vperm.xlu0 %731, %v653
        %v733 = vpop.permute.xlu0 %732
        %v735 = vlaneseq
        %v736 = vshrl.u32 %v735, 7
        %v737 = vsub.s32 0, %v736
        %v738 = vrot.slane %v654, %v737
        %v739 = vsub.f32 %v658, %v738
        %v740 = vsub.f32 %v663, %v738
        %v741 = vsub.f32 %v668, %v738
        %v742 = vsub.f32 %v673, %v738
        %v743 = vsub.f32 %v678, %v738
        %v744 = vsub.f32 %v683, %v738
        %v745 = vsub.f32 %v688, %v738
        %v746 = vsub.f32 %v693, %v738
        %v747 = vsub.f32 %v698, %v738
        %v748 = vsub.f32 %v703, %v738
        %v749 = vsub.f32 %v708, %v738
        %v750 = vsub.f32 %v713, %v738
        %v751 = vsub.f32 %v718, %v738
        %v752 = vsub.f32 %v723, %v738
        %v753 = vsub.f32 %v728, %v738
        %v754 = vsub.f32 %v733, %v738
        %755 = vset.pattern.permute.xlu0 1
        %756 = vperm.xlu0 %755, %v638
        %v757 = vpop.permute.xlu0 %756
        %759 = vset.pattern.permute.xlu0 1
        %760 = vperm.xlu0 %759, %v639
        %v761 = vpop.permute.xlu0 %760
        %763 = vset.pattern.permute.xlu0 1
        %764 = vperm.xlu0 %763, %v640
        %v765 = vpop.permute.xlu0 %764
        %767 = vset.pattern.permute.xlu0 1
        %768 = vperm.xlu0 %767, %v641
        %v769 = vpop.permute.xlu0 %768
        %771 = vset.pattern.permute.xlu0 1
        %772 = vperm.xlu0 %771, %v642
        %v773 = vpop.permute.xlu0 %772
        %775 = vset.pattern.permute.xlu0 1
        %776 = vperm.xlu0 %775, %v643
        %v777 = vpop.permute.xlu0 %776
        %779 = vset.pattern.permute.xlu0 1
        %780 = vperm.xlu0 %779, %v644
        %v781 = vpop.permute.xlu0 %780
        %783 = vset.pattern.permute.xlu0 1
        %784 = vperm.xlu0 %783, %v645
        %v785 = vpop.permute.xlu0 %784
        %787 = vset.pattern.permute.xlu0 1
        %788 = vperm.xlu0 %787, %v646
        %v789 = vpop.permute.xlu0 %788
        %791 = vset.pattern.permute.xlu0 1
        %792 = vperm.xlu0 %791, %v647
        %v793 = vpop.permute.xlu0 %792
        %795 = vset.pattern.permute.xlu0 1
        %796 = vperm.xlu0 %795, %v648
        %v797 = vpop.permute.xlu0 %796
        %799 = vset.pattern.permute.xlu0 1
        %800 = vperm.xlu0 %799, %v649
        %v801 = vpop.permute.xlu0 %800
        %803 = vset.pattern.permute.xlu0 1
        %804 = vperm.xlu0 %803, %v650
        %v805 = vpop.permute.xlu0 %804
        %807 = vset.pattern.permute.xlu0 1
        %808 = vperm.xlu0 %807, %v651
        %v809 = vpop.permute.xlu0 %808
        %811 = vset.pattern.permute.xlu0 1
        %812 = vperm.xlu0 %811, %v652
        %v813 = vpop.permute.xlu0 %812
        %815 = vset.pattern.permute.xlu0 1
        %816 = vperm.xlu0 %815, %v653
        %v817 = vpop.permute.xlu0 %816
        %v819 = vlaneseq
        %v820 = vshrl.u32 %v819, 7
        %v821 = vsub.s32 1, %v820
        %v822 = vrot.slane %v654, %v821
        %v823 = vsub.f32 %v757, %v822
        %v824 = vsub.f32 %v761, %v822
        %v825 = vsub.f32 %v765, %v822
        %v826 = vsub.f32 %v769, %v822
        %v827 = vsub.f32 %v773, %v822
        %v828 = vsub.f32 %v777, %v822
        %v829 = vsub.f32 %v781, %v822
        %v830 = vsub.f32 %v785, %v822
        %v831 = vsub.f32 %v789, %v822
        %v832 = vsub.f32 %v793, %v822
        %v833 = vsub.f32 %v797, %v822
        %v834 = vsub.f32 %v801, %v822
        %v835 = vsub.f32 %v805, %v822
        %v836 = vsub.f32 %v809, %v822
        %v837 = vsub.f32 %v813, %v822
        %v838 = vsub.f32 %v817, %v822
        %839 = vset.pattern.permute.xlu0 2
        %840 = vperm.xlu0 %839, %v638
        %v841 = vpop.permute.xlu0 %840
        %843 = vset.pattern.permute.xlu0 2
        %844 = vperm.xlu0 %843, %v639
        %v845 = vpop.permute.xlu0 %844
        %847 = vset.pattern.permute.xlu0 2
        %848 = vperm.xlu0 %847, %v640
        %v849 = vpop.permute.xlu0 %848
        %851 = vset.pattern.permute.xlu0 2
        %852 = vperm.xlu0 %851, %v641
        %v853 = vpop.permute.xlu0 %852
        %855 = vset.pattern.permute.xlu0 2
        %856 = vperm.xlu0 %855, %v642
        %v857 = vpop.permute.xlu0 %856
        %859 = vset.pattern.permute.xlu0 2
        %860 = vperm.xlu0 %859, %v643
        %v861 = vpop.permute.xlu0 %860
        %863 = vset.pattern.permute.xlu0 2
        %864 = vperm.xlu0 %863, %v644
        %v865 = vpop.permute.xlu0 %864
        %867 = vset.pattern.permute.xlu0 2
        %868 = vperm.xlu0 %867, %v645
        %v869 = vpop.permute.xlu0 %868
        %871 = vset.pattern.permute.xlu0 2
        %872 = vperm.xlu0 %871, %v646
        %v873 = vpop.permute.xlu0 %872
        %875 = vset.pattern.permute.xlu0 2
        %876 = vperm.xlu0 %875, %v647
        %v877 = vpop.permute.xlu0 %876
        %879 = vset.pattern.permute.xlu0 2
        %880 = vperm.xlu0 %879, %v648
        %v881 = vpop.permute.xlu0 %880
        %883 = vset.pattern.permute.xlu0 2
        %884 = vperm.xlu0 %883, %v649
        %v885 = vpop.permute.xlu0 %884
        %887 = vset.pattern.permute.xlu0 2
        %888 = vperm.xlu0 %887, %v650
        %v889 = vpop.permute.xlu0 %888
        %891 = vset.pattern.permute.xlu0 2
        %892 = vperm.xlu0 %891, %v651
        %v893 = vpop.permute.xlu0 %892
        %895 = vset.pattern.permute.xlu0 2
        %896 = vperm.xlu0 %895, %v652
        %v897 = vpop.permute.xlu0 %896
        %899 = vset.pattern.permute.xlu0 2
        %900 = vperm.xlu0 %899, %v653
        %v901 = vpop.permute.xlu0 %900
        %v903 = vlaneseq
        %v904 = vshrl.u32 %v903, 7
        %v905 = vsub.s32 2, %v904
        %v906 = vrot.slane %v654, %v905
        %v907 = vsub.f32 %v841, %v906
        %v908 = vsub.f32 %v845, %v906
        %v909 = vsub.f32 %v849, %v906
        %v910 = vsub.f32 %v853, %v906
        %v911 = vsub.f32 %v857, %v906
        %v912 = vsub.f32 %v861, %v906
        %v913 = vsub.f32 %v865, %v906
        %v914 = vsub.f32 %v869, %v906
        %v915 = vsub.f32 %v873, %v906
        %v916 = vsub.f32 %v877, %v906
        %v917 = vsub.f32 %v881, %v906
        %v918 = vsub.f32 %v885, %v906
        %v919 = vsub.f32 %v889, %v906
        %v920 = vsub.f32 %v893, %v906
        %v921 = vsub.f32 %v897, %v906
        %v922 = vsub.f32 %v901, %v906
        %v923 = vmul.f32 %v739, %v739
        %v924 = vmul.f32 %v740, %v740
        %v925 = vmul.f32 %v741, %v741
        %v926 = vmul.f32 %v742, %v742
        %v927 = vmul.f32 %v743, %v743
        %v928 = vmul.f32 %v744, %v744
        %v929 = vmul.f32 %v745, %v745
        %v930 = vmul.f32 %v746, %v746
        %v931 = vmul.f32 %v747, %v747
        %v932 = vmul.f32 %v748, %v748
        %v933 = vmul.f32 %v749, %v749
        %v934 = vmul.f32 %v750, %v750
        %v935 = vmul.f32 %v751, %v751
        %v936 = vmul.f32 %v752, %v752
        %v937 = vmul.f32 %v753, %v753
        %v938 = vmul.f32 %v754, %v754
        %v939 = vmul.f32 %v823, %v823
        %v940 = vmul.f32 %v824, %v824
        %v941 = vmul.f32 %v825, %v825
        %v942 = vmul.f32 %v826, %v826
        %v943 = vmul.f32 %v827, %v827
        %v944 = vmul.f32 %v828, %v828
        %v945 = vmul.f32 %v829, %v829
        %v946 = vmul.f32 %v830, %v830
        %v947 = vmul.f32 %v831, %v831
        %v948 = vmul.f32 %v832, %v832
        %v949 = vmul.f32 %v833, %v833
        %v950 = vmul.f32 %v834, %v834
        %v951 = vmul.f32 %v835, %v835
        %v952 = vmul.f32 %v836, %v836
        %v953 = vmul.f32 %v837, %v837
        %v954 = vmul.f32 %v838, %v838
        %v955 = vmul.f32 %v907, %v907
        %v956 = vmul.f32 %v908, %v908
        %v957 = vmul.f32 %v909, %v909
        %v958 = vmul.f32 %v910, %v910
        %v959 = vmul.f32 %v911, %v911
        %v960 = vmul.f32 %v912, %v912
        %v961 = vmul.f32 %v913, %v913
        %v962 = vmul.f32 %v914, %v914
        %v963 = vmul.f32 %v915, %v915
        %v964 = vmul.f32 %v916, %v916
        %v965 = vmul.f32 %v917, %v917
        %v966 = vmul.f32 %v918, %v918
        %v967 = vmul.f32 %v919, %v919
        %v968 = vmul.f32 %v920, %v920
        %v969 = vmul.f32 %v921, %v921
        %v970 = vmul.f32 %v922, %v922
        %v971 = vadd.f32 %v923, %v939
        %v972 = vadd.f32 %v924, %v940
        %v973 = vadd.f32 %v925, %v941
        %v974 = vadd.f32 %v926, %v942
        %v975 = vadd.f32 %v927, %v943
        %v976 = vadd.f32 %v928, %v944
        %v977 = vadd.f32 %v929, %v945
        %v978 = vadd.f32 %v930, %v946
        %v979 = vadd.f32 %v931, %v947
        %v980 = vadd.f32 %v932, %v948
        %v981 = vadd.f32 %v933, %v949
        %v982 = vadd.f32 %v934, %v950
        %v983 = vadd.f32 %v935, %v951
        %v984 = vadd.f32 %v936, %v952
        %v985 = vadd.f32 %v937, %v953
        %v986 = vadd.f32 %v938, %v954
        %v987 = vadd.f32 %v971, %v955
        %v988 = vadd.f32 %v972, %v956
        %v989 = vadd.f32 %v973, %v957
        %v990 = vadd.f32 %v974, %v958
        %v991 = vadd.f32 %v975, %v959
        %v992 = vadd.f32 %v976, %v960
        %v993 = vadd.f32 %v977, %v961
        %v994 = vadd.f32 %v978, %v962
        %v995 = vadd.f32 %v979, %v963
        %v996 = vadd.f32 %v980, %v964
        %v997 = vadd.f32 %v981, %v965
        %v998 = vadd.f32 %v982, %v966
        %v999 = vadd.f32 %v983, %v967
        %v1000 = vadd.f32 %v984, %v968
        %v1001 = vadd.f32 %v985, %v969
        %v1002 = vadd.f32 %v986, %v970
        %v1003 = vsub.f32 %v987, 0.16
        %v1004 = vsub.f32 %v988, 0.16
        %v1005 = vsub.f32 %v989, 0.16
        %v1006 = vsub.f32 %v990, 0.16
        %v1007 = vsub.f32 %v991, 0.16
        %v1008 = vsub.f32 %v992, 0.16
        %v1009 = vsub.f32 %v993, 0.16
        %v1010 = vsub.f32 %v994, 0.16
        %v1011 = vsub.f32 %v995, 0.16
        %v1012 = vsub.f32 %v996, 0.16
        %v1013 = vsub.f32 %v997, 0.16
        %v1014 = vsub.f32 %v998, 0.16
        %v1015 = vsub.f32 %v999, 0.16
        %v1016 = vsub.f32 %v1000, 0.16
        %v1017 = vsub.f32 %v1001, 0.16
        %v1018 = vsub.f32 %v1002, 0.16
        %v1019 = vrcp.pop 0.65
        %v1020 = vmul.f32 %v1003, %v1019
        %v1021 = vmul.f32 %v1004, %v1019
        %v1022 = vmul.f32 %v1005, %v1019
        %v1023 = vmul.f32 %v1006, %v1019
        %v1024 = vmul.f32 %v1007, %v1019
        %v1025 = vmul.f32 %v1008, %v1019
        %v1026 = vmul.f32 %v1009, %v1019
        %v1027 = vmul.f32 %v1010, %v1019
        %v1028 = vmul.f32 %v1011, %v1019
        %v1029 = vmul.f32 %v1012, %v1019
        %v1030 = vmul.f32 %v1013, %v1019
        %v1031 = vmul.f32 %v1014, %v1019
        %v1032 = vmul.f32 %v1015, %v1019
        %v1033 = vmul.f32 %v1016, %v1019
        %v1034 = vmul.f32 %v1017, %v1019
        %v1035 = vmul.f32 %v1018, %v1019
        %v1036 = vsub.f32 1.0, %v1020
        %v1037 = vsub.f32 1.0, %v1021
        %v1038 = vsub.f32 1.0, %v1022
        %v1039 = vsub.f32 1.0, %v1023
        %v1040 = vsub.f32 1.0, %v1024
        %v1041 = vsub.f32 1.0, %v1025
        %v1042 = vsub.f32 1.0, %v1026
        %v1043 = vsub.f32 1.0, %v1027
        %v1044 = vsub.f32 1.0, %v1028
        %v1045 = vsub.f32 1.0, %v1029
        %v1046 = vsub.f32 1.0, %v1030
        %v1047 = vsub.f32 1.0, %v1031
        %v1048 = vsub.f32 1.0, %v1032
        %v1049 = vsub.f32 1.0, %v1033
        %v1050 = vsub.f32 1.0, %v1034
        %v1051 = vsub.f32 1.0, %v1035
        %v1052 = vmax.f32 %v1036, 0.0
        %v1053 = vmax.f32 %v1037, 0.0
        %v1054 = vmax.f32 %v1038, 0.0
        %v1055 = vmax.f32 %v1039, 0.0
        %v1056 = vmax.f32 %v1040, 0.0
        %v1057 = vmax.f32 %v1041, 0.0
        %v1058 = vmax.f32 %v1042, 0.0
        %v1059 = vmax.f32 %v1043, 0.0
        %v1060 = vmax.f32 %v1044, 0.0
        %v1061 = vmax.f32 %v1045, 0.0
        %v1062 = vmax.f32 %v1046, 0.0
        %v1063 = vmax.f32 %v1047, 0.0
        %v1064 = vmax.f32 %v1048, 0.0
        %v1065 = vmax.f32 %v1049, 0.0
        %v1066 = vmax.f32 %v1050, 0.0
        %v1067 = vmax.f32 %v1051, 0.0
        %v1068 = vadd.f32 %v1052, %v1053
        %v1069 = vadd.f32 %v1068, %v1054
        %v1070 = vadd.f32 %v1069, %v1055
        %v1071 = vadd.f32 %v1070, %v1056
        %v1072 = vadd.f32 %v1071, %v1057
        %v1073 = vadd.f32 %v1072, %v1058
        %v1074 = vadd.f32 %v1073, %v1059
        %v1075 = vadd.f32 %v1074, %v1060
        %v1076 = vadd.f32 %v1075, %v1061
        %v1077 = vadd.f32 %v1076, %v1062
        %v1078 = vadd.f32 %v1077, %v1063
        %v1079 = vadd.f32 %v1078, %v1064
        %v1080 = vadd.f32 %v1079, %v1065
        %v1081 = vadd.f32 %v1080, %v1066
        %v1082 = vadd.f32 %v1081, %v1067
        %v1083 = vrot.slane %v1082, 4
        %v1084 = vadd.f32 %v1082, %v1083
        %v1085 = vrot.slane %v1084, 2
        %v1086 = vadd.f32 %v1084, %v1085
        %v1087 = vrot.slane %v1086, 1
        %v1088 = vadd.f32 %v1086, %v1087
        %v1089 = vrcp.pop %v1088
        %v1090 = vmul.f32 %v1052, %v1089
        %v1091 = vmul.f32 %v1053, %v1089
        %v1092 = vmul.f32 %v1054, %v1089
        %v1093 = vmul.f32 %v1055, %v1089
        %v1094 = vmul.f32 %v1056, %v1089
        %v1095 = vmul.f32 %v1057, %v1089
        %v1096 = vmul.f32 %v1058, %v1089
        %v1097 = vmul.f32 %v1059, %v1089
        %v1098 = vmul.f32 %v1060, %v1089
        %v1099 = vmul.f32 %v1061, %v1089
        %v1100 = vmul.f32 %v1062, %v1089
        %v1101 = vmul.f32 %v1063, %v1089
        %v1102 = vmul.f32 %v1064, %v1089
        %v1103 = vmul.f32 %v1065, %v1089
        %v1104 = vmul.f32 %v1066, %v1089
        %v1105 = vmul.f32 %v1067, %v1089
        %v1106 = vadd.f32 %v987, 1e-12
        %v1107 = vadd.f32 %v988, 1e-12
        %v1108 = vadd.f32 %v989, 1e-12
        %v1109 = vadd.f32 %v990, 1e-12
        %v1110 = vadd.f32 %v991, 1e-12
        %v1111 = vadd.f32 %v992, 1e-12
        %v1112 = vadd.f32 %v993, 1e-12
        %v1113 = vadd.f32 %v994, 1e-12
        %v1114 = vadd.f32 %v995, 1e-12
        %v1115 = vadd.f32 %v996, 1e-12
        %v1116 = vadd.f32 %v997, 1e-12
        %v1117 = vadd.f32 %v998, 1e-12
        %v1118 = vadd.f32 %v999, 1e-12
        %v1119 = vadd.f32 %v1000, 1e-12
        %v1120 = vadd.f32 %v1001, 1e-12
        %v1121 = vadd.f32 %v1002, 1e-12
        %v1122 = vrcp.pop %v1106
        %v1123 = vrcp.pop %v1107
        %v1124 = vrcp.pop %v1108
        %v1125 = vrcp.pop %v1109
        %v1126 = vrcp.pop %v1110
        %v1127 = vrcp.pop %v1111
        %v1128 = vrcp.pop %v1112
        %v1129 = vrcp.pop %v1113
        %v1130 = vrcp.pop %v1114
        %v1131 = vrcp.pop %v1115
        %v1132 = vrcp.pop %v1116
        %v1133 = vrcp.pop %v1117
        %v1134 = vrcp.pop %v1118
        %v1135 = vrcp.pop %v1119
        %v1136 = vrcp.pop %v1120
        %v1137 = vrcp.pop %v1121
        %v1138 = vmul.f32 %v1090, %v1122
        %v1139 = vmul.f32 %v1091, %v1123
        %v1140 = vmul.f32 %v1092, %v1124
        %v1141 = vmul.f32 %v1093, %v1125
        %v1142 = vmul.f32 %v1094, %v1126
        %v1143 = vmul.f32 %v1095, %v1127
        %v1144 = vmul.f32 %v1096, %v1128
        %v1145 = vmul.f32 %v1097, %v1129
        %v1146 = vmul.f32 %v1098, %v1130
        %v1147 = vmul.f32 %v1099, %v1131
        %v1148 = vmul.f32 %v1100, %v1132
        %v1149 = vmul.f32 %v1101, %v1133
        %v1150 = vmul.f32 %v1102, %v1134
        %v1151 = vmul.f32 %v1103, %v1135
        %v1152 = vmul.f32 %v1104, %v1136
        %v1153 = vmul.f32 %v1105, %v1137
        %v1154 = vmax.f32 %v907, 0.0
        %v1155 = vmax.f32 %v908, 0.0
        %v1156 = vmax.f32 %v909, 0.0
        %v1157 = vmax.f32 %v910, 0.0
        %v1158 = vmax.f32 %v911, 0.0
        %v1159 = vmax.f32 %v912, 0.0
        %v1160 = vmax.f32 %v913, 0.0
        %v1161 = vmax.f32 %v914, 0.0
        %v1162 = vmax.f32 %v915, 0.0
        %v1163 = vmax.f32 %v916, 0.0
        %v1164 = vmax.f32 %v917, 0.0
        %v1165 = vmax.f32 %v918, 0.0
        %v1166 = vmax.f32 %v919, 0.0
        %v1167 = vmax.f32 %v920, 0.0
        %v1168 = vmax.f32 %v921, 0.0
        %v1169 = vmax.f32 %v922, 0.0
        %v1170 = vmul.f32 %v1154, %v1154
        %v1171 = vmul.f32 %v1155, %v1155
        %v1172 = vmul.f32 %v1156, %v1156
        %v1173 = vmul.f32 %v1157, %v1157
        %v1174 = vmul.f32 %v1158, %v1158
        %v1175 = vmul.f32 %v1159, %v1159
        %v1176 = vmul.f32 %v1160, %v1160
        %v1177 = vmul.f32 %v1161, %v1161
        %v1178 = vmul.f32 %v1162, %v1162
        %v1179 = vmul.f32 %v1163, %v1163
        %v1180 = vmul.f32 %v1164, %v1164
        %v1181 = vmul.f32 %v1165, %v1165
        %v1182 = vmul.f32 %v1166, %v1166
        %v1183 = vmul.f32 %v1167, %v1167
        %v1184 = vmul.f32 %v1168, %v1168
        %v1185 = vmul.f32 %v1169, %v1169
        %v1186 = vmul.f32 %v1170, %v1138
        %v1187 = vmul.f32 %v1171, %v1139
        %v1188 = vmul.f32 %v1172, %v1140
        %v1189 = vmul.f32 %v1173, %v1141
        %v1190 = vmul.f32 %v1174, %v1142
        %v1191 = vmul.f32 %v1175, %v1143
        %v1192 = vmul.f32 %v1176, %v1144
        %v1193 = vmul.f32 %v1177, %v1145
        %v1194 = vmul.f32 %v1178, %v1146
        %v1195 = vmul.f32 %v1179, %v1147
        %v1196 = vmul.f32 %v1180, %v1148
        %v1197 = vmul.f32 %v1181, %v1149
        %v1198 = vmul.f32 %v1182, %v1150
        %v1199 = vmul.f32 %v1183, %v1151
        %v1200 = vmul.f32 %v1184, %v1152
        %v1201 = vmul.f32 %v1185, %v1153
        %v1202 = vmul.f32 %v955, %v1138
        %v1203 = vmul.f32 %v956, %v1139
        %v1204 = vmul.f32 %v957, %v1140
        %v1205 = vmul.f32 %v958, %v1141
        %v1206 = vmul.f32 %v959, %v1142
        %v1207 = vmul.f32 %v960, %v1143
        %v1208 = vmul.f32 %v961, %v1144
        %v1209 = vmul.f32 %v962, %v1145
        %v1210 = vmul.f32 %v963, %v1146
        %v1211 = vmul.f32 %v964, %v1147
        %v1212 = vmul.f32 %v965, %v1148
        %v1213 = vmul.f32 %v966, %v1149
        %v1214 = vmul.f32 %v967, %v1150
        %v1215 = vmul.f32 %v968, %v1151
        %v1216 = vmul.f32 %v969, %v1152
        %v1217 = vmul.f32 %v970, %v1153
        %v1218 = vsub.f32 %v1202, %v1186
        %v1219 = vsub.f32 %v1203, %v1187
        %v1220 = vsub.f32 %v1204, %v1188
        %v1221 = vsub.f32 %v1205, %v1189
        %v1222 = vsub.f32 %v1206, %v1190
        %v1223 = vsub.f32 %v1207, %v1191
        %v1224 = vsub.f32 %v1208, %v1192
        %v1225 = vsub.f32 %v1209, %v1193
        %v1226 = vsub.f32 %v1210, %v1194
        %v1227 = vsub.f32 %v1211, %v1195
        %v1228 = vsub.f32 %v1212, %v1196
        %v1229 = vsub.f32 %v1213, %v1197
        %v1230 = vsub.f32 %v1214, %v1198
        %v1231 = vsub.f32 %v1215, %v1199
        %v1232 = vsub.f32 %v1216, %v1200
        %v1233 = vsub.f32 %v1217, %v1201
        %v1234 = vld [vmem:[#allocation2] sm:$0xff]
        %v1235 = vld [vmem:[#allocation2 + $0x8] sm:$0xff]
        %v1236 = vpack.c.bf16 %v1187, %v1186
        %v1237 = vpack.c.bf16 %v1189, %v1188
        %v1238 = vpack.c.bf16 %v1191, %v1190
        %v1239 = vpack.c.bf16 %v1193, %v1192
        %v1240 = vpack.c.bf16 %v1195, %v1194
        %v1241 = vpack.c.bf16 %v1197, %v1196
        %v1242 = vpack.c.bf16 %v1199, %v1198
        %v1243 = vpack.c.bf16 %v1201, %v1200
        %v1244 = vpack.c.bf16 %v1219, %v1218
        %v1245 = vpack.c.bf16 %v1221, %v1220
        %v1246 = vpack.c.bf16 %v1223, %v1222
        %v1247 = vpack.c.bf16 %v1225, %v1224
        %v1248 = vpack.c.bf16 %v1227, %v1226
        %v1249 = vpack.c.bf16 %v1229, %v1228
        %v1250 = vpack.c.bf16 %v1231, %v1230
        %v1251 = vpack.c.bf16 %v1233, %v1232
        %1252 = vmatprep.subr.bf16.mxu0 0
        %1253 = vmatpush1.bf16.msra.mxu0 %v1244
        %1254 = vmatprep.subr.bf16.mxu0 0
        %1255 = vmatpush1.bf16.msra.mxu0 %v1245
        %1256 = vmatprep.subr.bf16.mxu0 0
        %1257 = vmatpush1.bf16.msra.mxu0 %v1246
        %1258 = vmatprep.subr.bf16.mxu0 0
        %1259 = vmatpush1.bf16.msra.mxu0 %v1247
        %1260 = vmatprep.subr.bf16.mxu0 0
        %1261 = vmatpush1.bf16.msra.mxu0 %v1248
        %1262 = vmatprep.subr.bf16.mxu0 0
        %1263 = vmatpush1.bf16.msra.mxu0 %v1249
        %1264 = vmatprep.subr.bf16.mxu0 0
        %1265 = vmatpush1.bf16.msra.mxu0 %v1250
        %1266 = vmatprep.subr.bf16.mxu0 0
        %1267 = vmatpush1.bf16.msra.mxu0 %v1251
        %1268 = vmatprep.subr.bf16.mxu0 0
        %1269 = vmatpush1.bf16.msra.mxu0 0
        %1270 = vmatprep.subr.bf16.mxu0 0
        %1271 = vmatpush1.bf16.msra.mxu0 0
        %1272 = vmatprep.subr.bf16.mxu0 0
        %1273 = vmatpush1.bf16.msra.mxu0 0
        %1274 = vmatprep.subr.bf16.mxu0 0
        %1275 = vmatpush1.bf16.msra.mxu0 0
        %1276 = vmatprep.subr.bf16.mxu0 0
        %1277 = vmatpush1.bf16.msra.mxu0 0
        %1278 = vmatprep.subr.bf16.mxu0 0
        %1279 = vmatpush1.bf16.msra.mxu0 0
        %1280 = vmatprep.subr.bf16.mxu0 0
        %1281 = vmatpush1.bf16.msra.mxu0 0
        %1282 = vmatprep.subr.bf16.mxu0 0
        %1283 = vmatpush1.bf16.msra.mxu0 0
        %1284 = vmatprep.mubr.bf16.mxu0 0
        %1285 = vmatmul.mubr.bf16.gmra.mrb[0].mxu0 %v1235
        %v1286 = vpop.f32.mrb[0].mxu0
        %v1287 = vadd.f32 0.0, %v1286
        %v1288 = vpop.f32.mrb[0].mxu0
        %v1289 = vpop.f32.mrb[0].mxu0
        %v1290 = vadd.f32 0.0, %v1289
        %v1291 = vpop.f32.mrb[0].mxu0
        %1292 = vdwg.mxu0
        %1293 = vmatprep.subr.bf16.mxu0 0
        %1294 = vmatpush1.bf16.msra.mxu0 %v1236
        %1295 = vmatprep.subr.bf16.mxu0 0
        %1296 = vmatpush1.bf16.msra.mxu0 %v1237
        %1297 = vmatprep.subr.bf16.mxu0 0
        %1298 = vmatpush1.bf16.msra.mxu0 %v1238
        %1299 = vmatprep.subr.bf16.mxu0 0
        %1300 = vmatpush1.bf16.msra.mxu0 %v1239
        %1301 = vmatprep.subr.bf16.mxu0 0
        %1302 = vmatpush1.bf16.msra.mxu0 %v1240
        %1303 = vmatprep.subr.bf16.mxu0 0
        %1304 = vmatpush1.bf16.msra.mxu0 %v1241
        %1305 = vmatprep.subr.bf16.mxu0 0
        %1306 = vmatpush1.bf16.msra.mxu0 %v1242
        %1307 = vmatprep.subr.bf16.mxu0 0
        %1308 = vmatpush1.bf16.msra.mxu0 %v1243
        %1309 = vmatprep.subr.bf16.mxu0 0
        %1310 = vmatpush1.bf16.msra.mxu0 0
        %1311 = vmatprep.subr.bf16.mxu0 0
        %1312 = vmatpush1.bf16.msra.mxu0 0
        %1313 = vmatprep.subr.bf16.mxu0 0
        %1314 = vmatpush1.bf16.msra.mxu0 0
        %1315 = vmatprep.subr.bf16.mxu0 0
        %1316 = vmatpush1.bf16.msra.mxu0 0
        %1317 = vmatprep.subr.bf16.mxu0 0
        %1318 = vmatpush1.bf16.msra.mxu0 0
        %1319 = vmatprep.subr.bf16.mxu0 0
        %1320 = vmatpush1.bf16.msra.mxu0 0
        %1321 = vmatprep.subr.bf16.mxu0 0
        %1322 = vmatpush1.bf16.msra.mxu0 0
        %1323 = vmatprep.subr.bf16.mxu0 0
        %1324 = vmatpush1.bf16.msra.mxu0 0
        %1325 = vmatprep.mubr.bf16.mxu0 0
        %1326 = vmatmul.mubr.bf16.gmra.mrb[0].mxu0 %v1234
        %v1327 = vpop.f32.mrb[0].mxu0
        %v1328 = vadd.f32 %v1287, %v1327
        %v1329 = vpop.f32.mrb[0].mxu0
        %v1330 = vpop.f32.mrb[0].mxu0
        %v1331 = vadd.f32 %v1290, %v1330
        %v1332 = vpop.f32.mrb[0].mxu0
        %1333 = vdwg.mxu0
        %v1334 = vmax.f32 %v823, 0.0
        %v1335 = vmax.f32 %v824, 0.0
        %v1336 = vmax.f32 %v825, 0.0
        %v1337 = vmax.f32 %v826, 0.0
        %v1338 = vmax.f32 %v827, 0.0
        %v1339 = vmax.f32 %v828, 0.0
        %v1340 = vmax.f32 %v829, 0.0
        %v1341 = vmax.f32 %v830, 0.0
        %v1342 = vmax.f32 %v831, 0.0
        %v1343 = vmax.f32 %v832, 0.0
        %v1344 = vmax.f32 %v833, 0.0
        %v1345 = vmax.f32 %v834, 0.0
        %v1346 = vmax.f32 %v835, 0.0
        %v1347 = vmax.f32 %v836, 0.0
        %v1348 = vmax.f32 %v837, 0.0
        %v1349 = vmax.f32 %v838, 0.0
        %v1350 = vmul.f32 %v1334, %v1334
        %v1351 = vmul.f32 %v1335, %v1335
        %v1352 = vmul.f32 %v1336, %v1336
        %v1353 = vmul.f32 %v1337, %v1337
        %v1354 = vmul.f32 %v1338, %v1338
        %v1355 = vmul.f32 %v1339, %v1339
        %v1356 = vmul.f32 %v1340, %v1340
        %v1357 = vmul.f32 %v1341, %v1341
        %v1358 = vmul.f32 %v1342, %v1342
        %v1359 = vmul.f32 %v1343, %v1343
        %v1360 = vmul.f32 %v1344, %v1344
        %v1361 = vmul.f32 %v1345, %v1345
        %v1362 = vmul.f32 %v1346, %v1346
        %v1363 = vmul.f32 %v1347, %v1347
        %v1364 = vmul.f32 %v1348, %v1348
        %v1365 = vmul.f32 %v1349, %v1349
        %v1366 = vmul.f32 %v1350, %v1138
        %v1367 = vmul.f32 %v1351, %v1139
        %v1368 = vmul.f32 %v1352, %v1140
        %v1369 = vmul.f32 %v1353, %v1141
        %v1370 = vmul.f32 %v1354, %v1142
        %v1371 = vmul.f32 %v1355, %v1143
        %v1372 = vmul.f32 %v1356, %v1144
        %v1373 = vmul.f32 %v1357, %v1145
        %v1374 = vmul.f32 %v1358, %v1146
        %v1375 = vmul.f32 %v1359, %v1147
        %v1376 = vmul.f32 %v1360, %v1148
        %v1377 = vmul.f32 %v1361, %v1149
        %v1378 = vmul.f32 %v1362, %v1150
        %v1379 = vmul.f32 %v1363, %v1151
        %v1380 = vmul.f32 %v1364, %v1152
        %v1381 = vmul.f32 %v1365, %v1153
        %v1382 = vmul.f32 %v939, %v1138
        %v1383 = vmul.f32 %v940, %v1139
        %v1384 = vmul.f32 %v941, %v1140
        %v1385 = vmul.f32 %v942, %v1141
        %v1386 = vmul.f32 %v943, %v1142
        %v1387 = vmul.f32 %v944, %v1143
        %v1388 = vmul.f32 %v945, %v1144
        %v1389 = vmul.f32 %v946, %v1145
        %v1390 = vmul.f32 %v947, %v1146
        %v1391 = vmul.f32 %v948, %v1147
        %v1392 = vmul.f32 %v949, %v1148
        %v1393 = vmul.f32 %v950, %v1149
        %v1394 = vmul.f32 %v951, %v1150
        %v1395 = vmul.f32 %v952, %v1151
        %v1396 = vmul.f32 %v953, %v1152
        %v1397 = vmul.f32 %v954, %v1153
        %v1398 = vsub.f32 %v1382, %v1366
        %v1399 = vsub.f32 %v1383, %v1367
        %v1400 = vsub.f32 %v1384, %v1368
        %v1401 = vsub.f32 %v1385, %v1369
        %v1402 = vsub.f32 %v1386, %v1370
        %v1403 = vsub.f32 %v1387, %v1371
        %v1404 = vsub.f32 %v1388, %v1372
        %v1405 = vsub.f32 %v1389, %v1373
        %v1406 = vsub.f32 %v1390, %v1374
        %v1407 = vsub.f32 %v1391, %v1375
        %v1408 = vsub.f32 %v1392, %v1376
        %v1409 = vsub.f32 %v1393, %v1377
        %v1410 = vsub.f32 %v1394, %v1378
        %v1411 = vsub.f32 %v1395, %v1379
        %v1412 = vsub.f32 %v1396, %v1380
        %v1413 = vsub.f32 %v1397, %v1381
        %v1414 = vld [vmem:[#allocation2 + $0x10] sm:$0xff]
        %v1415 = vld [vmem:[#allocation2 + $0x18] sm:$0xff]
        %v1416 = vpack.c.bf16 %v1367, %v1366
        %v1417 = vpack.c.bf16 %v1369, %v1368
        %v1418 = vpack.c.bf16 %v1371, %v1370
        %v1419 = vpack.c.bf16 %v1373, %v1372
        %v1420 = vpack.c.bf16 %v1375, %v1374
        %v1421 = vpack.c.bf16 %v1377, %v1376
        %v1422 = vpack.c.bf16 %v1379, %v1378
        %v1423 = vpack.c.bf16 %v1381, %v1380
        %1424 = vmatprep.subr.bf16.mxu0 0
        %1425 = vmatpush1.bf16.msra.mxu0 %v1416
        %1426 = vmatprep.subr.bf16.mxu0 0
        %1427 = vmatpush1.bf16.msra.mxu0 %v1417
        %1428 = vmatprep.subr.bf16.mxu0 0
        %1429 = vmatpush1.bf16.msra.mxu0 %v1418
        %1430 = vmatprep.subr.bf16.mxu0 0
        %1431 = vmatpush1.bf16.msra.mxu0 %v1419
        %1432 = vmatprep.subr.bf16.mxu0 0
        %1433 = vmatpush1.bf16.msra.mxu0 %v1420
        %1434 = vmatprep.subr.bf16.mxu0 0
        %1435 = vmatpush1.bf16.msra.mxu0 %v1421
        %1436 = vmatprep.subr.bf16.mxu0 0
        %1437 = vmatpush1.bf16.msra.mxu0 %v1422
        %1438 = vmatprep.subr.bf16.mxu0 0
        %1439 = vmatpush1.bf16.msra.mxu0 %v1423
        %1440 = vmatprep.subr.bf16.mxu0 0
        %1441 = vmatpush1.bf16.msra.mxu0 0
        %1442 = vmatprep.subr.bf16.mxu0 0
        %1443 = vmatpush1.bf16.msra.mxu0 0
        %1444 = vmatprep.subr.bf16.mxu0 0
        %1445 = vmatpush1.bf16.msra.mxu0 0
        %1446 = vmatprep.subr.bf16.mxu0 0
        %1447 = vmatpush1.bf16.msra.mxu0 0
        %1448 = vmatprep.subr.bf16.mxu0 0
        %1449 = vmatpush1.bf16.msra.mxu0 0
        %1450 = vmatprep.subr.bf16.mxu0 0
        %1451 = vmatpush1.bf16.msra.mxu0 0
        %1452 = vmatprep.subr.bf16.mxu0 0
        %1453 = vmatpush1.bf16.msra.mxu0 0
        %1454 = vmatprep.subr.bf16.mxu0 0
        %1455 = vmatpush1.bf16.msra.mxu0 0
        %1456 = vmatprep.mubr.bf16.mxu0 0
        %1457 = vmatmul.mubr.bf16.gmra.mrb[0].mxu0 %v1414
        %v1458 = vpop.f32.mrb[0].mxu0
        %v1459 = vadd.f32 0.0, %v1458
        %v1460 = vpop.f32.mrb[0].mxu0
        %v1461 = vpop.f32.mrb[0].mxu0
        %v1462 = vadd.f32 0.0, %v1461
        %v1463 = vpop.f32.mrb[0].mxu0
        %1464 = vdwg.mxu0
        %v1465 = vadd.f32 %v1328, %v1459
        %v1466 = vadd.f32 %v1331, %v1462
        %v1467 = vpack.c.bf16 %v1399, %v1398
        %v1468 = vpack.c.bf16 %v1401, %v1400
        %v1469 = vpack.c.bf16 %v1403, %v1402
        %v1470 = vpack.c.bf16 %v1405, %v1404
        %v1471 = vpack.c.bf16 %v1407, %v1406
        %v1472 = vpack.c.bf16 %v1409, %v1408
        %v1473 = vpack.c.bf16 %v1411, %v1410
        %v1474 = vpack.c.bf16 %v1413, %v1412
        %1475 = vmatprep.subr.bf16.mxu0 0
        %1476 = vmatpush1.bf16.msra.mxu0 %v1467
        %1477 = vmatprep.subr.bf16.mxu0 0
        %1478 = vmatpush1.bf16.msra.mxu0 %v1468
        %1479 = vmatprep.subr.bf16.mxu0 0
        %1480 = vmatpush1.bf16.msra.mxu0 %v1469
        %1481 = vmatprep.subr.bf16.mxu0 0
        %1482 = vmatpush1.bf16.msra.mxu0 %v1470
        %1483 = vmatprep.subr.bf16.mxu0 0
        %1484 = vmatpush1.bf16.msra.mxu0 %v1471
        %1485 = vmatprep.subr.bf16.mxu0 0
        %1486 = vmatpush1.bf16.msra.mxu0 %v1472
        %1487 = vmatprep.subr.bf16.mxu0 0
        %1488 = vmatpush1.bf16.msra.mxu0 %v1473
        %1489 = vmatprep.subr.bf16.mxu0 0
        %1490 = vmatpush1.bf16.msra.mxu0 %v1474
        %1491 = vmatprep.subr.bf16.mxu0 0
        %1492 = vmatpush1.bf16.msra.mxu0 0
        %1493 = vmatprep.subr.bf16.mxu0 0
        %1494 = vmatpush1.bf16.msra.mxu0 0
        %1495 = vmatprep.subr.bf16.mxu0 0
        %1496 = vmatpush1.bf16.msra.mxu0 0
        %1497 = vmatprep.subr.bf16.mxu0 0
        %1498 = vmatpush1.bf16.msra.mxu0 0
        %1499 = vmatprep.subr.bf16.mxu0 0
        %1500 = vmatpush1.bf16.msra.mxu0 0
        %1501 = vmatprep.subr.bf16.mxu0 0
        %1502 = vmatpush1.bf16.msra.mxu0 0
        %1503 = vmatprep.subr.bf16.mxu0 0
        %1504 = vmatpush1.bf16.msra.mxu0 0
        %1505 = vmatprep.subr.bf16.mxu0 0
        %1506 = vmatpush1.bf16.msra.mxu0 0
        %1507 = vmatprep.mubr.bf16.mxu0 0
        %1508 = vmatmul.mubr.bf16.gmra.mrb[0].mxu0 %v1415
        %v1509 = vpop.f32.mrb[0].mxu0
        %v1510 = vadd.f32 0.0, %v1509
        %v1511 = vpop.f32.mrb[0].mxu0
        %v1512 = vpop.f32.mrb[0].mxu0
        %v1513 = vadd.f32 0.0, %v1512
        %v1514 = vpop.f32.mrb[0].mxu0
        %1515 = vdwg.mxu0
        %v1516 = vadd.f32 %v1465, %v1510
        %v1517 = vadd.f32 %v1466, %v1513
        %v1518 = vmax.f32 %v739, 0.0
        %v1519 = vmax.f32 %v740, 0.0
        %v1520 = vmax.f32 %v741, 0.0
        %v1521 = vmax.f32 %v742, 0.0
        %v1522 = vmax.f32 %v743, 0.0
        %v1523 = vmax.f32 %v744, 0.0
        %v1524 = vmax.f32 %v745, 0.0
        %v1525 = vmax.f32 %v746, 0.0
        %v1526 = vmax.f32 %v747, 0.0
        %v1527 = vmax.f32 %v748, 0.0
        %v1528 = vmax.f32 %v749, 0.0
        %v1529 = vmax.f32 %v750, 0.0
        %v1530 = vmax.f32 %v751, 0.0
        %v1531 = vmax.f32 %v752, 0.0
        %v1532 = vmax.f32 %v753, 0.0
        %v1533 = vmax.f32 %v754, 0.0
        %v1534 = vmul.f32 %v1518, %v1518
        %v1535 = vmul.f32 %v1519, %v1519
        %v1536 = vmul.f32 %v1520, %v1520
        %v1537 = vmul.f32 %v1521, %v1521
        %v1538 = vmul.f32 %v1522, %v1522
        %v1539 = vmul.f32 %v1523, %v1523
        %v1540 = vmul.f32 %v1524, %v1524
        %v1541 = vmul.f32 %v1525, %v1525
        %v1542 = vmul.f32 %v1526, %v1526
        %v1543 = vmul.f32 %v1527, %v1527
        %v1544 = vmul.f32 %v1528, %v1528
        %v1545 = vmul.f32 %v1529, %v1529
        %v1546 = vmul.f32 %v1530, %v1530
        %v1547 = vmul.f32 %v1531, %v1531
        %v1548 = vmul.f32 %v1532, %v1532
        %v1549 = vmul.f32 %v1533, %v1533
        %v1550 = vmul.f32 %v1534, %v1138
        %v1551 = vmul.f32 %v1535, %v1139
        %v1552 = vmul.f32 %v1536, %v1140
        %v1553 = vmul.f32 %v1537, %v1141
        %v1554 = vmul.f32 %v1538, %v1142
        %v1555 = vmul.f32 %v1539, %v1143
        %v1556 = vmul.f32 %v1540, %v1144
        %v1557 = vmul.f32 %v1541, %v1145
        %v1558 = vmul.f32 %v1542, %v1146
        %v1559 = vmul.f32 %v1543, %v1147
        %v1560 = vmul.f32 %v1544, %v1148
        %v1561 = vmul.f32 %v1545, %v1149
        %v1562 = vmul.f32 %v1546, %v1150
        %v1563 = vmul.f32 %v1547, %v1151
        %v1564 = vmul.f32 %v1548, %v1152
        %v1565 = vmul.f32 %v1549, %v1153
        %v1566 = vmul.f32 %v923, %v1138
        %v1567 = vmul.f32 %v924, %v1139
        %v1568 = vmul.f32 %v925, %v1140
        %v1569 = vmul.f32 %v926, %v1141
        %v1570 = vmul.f32 %v927, %v1142
        %v1571 = vmul.f32 %v928, %v1143
        %v1572 = vmul.f32 %v929, %v1144
        %v1573 = vmul.f32 %v930, %v1145
        %v1574 = vmul.f32 %v931, %v1146
        %v1575 = vmul.f32 %v932, %v1147
        %v1576 = vmul.f32 %v933, %v1148
        %v1577 = vmul.f32 %v934, %v1149
        %v1578 = vmul.f32 %v935, %v1150
        %v1579 = vmul.f32 %v936, %v1151
        %v1580 = vmul.f32 %v937, %v1152
        %v1581 = vmul.f32 %v938, %v1153
        %v1582 = vsub.f32 %v1566, %v1550
        %v1583 = vsub.f32 %v1567, %v1551
        %v1584 = vsub.f32 %v1568, %v1552
        %v1585 = vsub.f32 %v1569, %v1553
        %v1586 = vsub.f32 %v1570, %v1554
        %v1587 = vsub.f32 %v1571, %v1555
        %v1588 = vsub.f32 %v1572, %v1556
        %v1589 = vsub.f32 %v1573, %v1557
        %v1590 = vsub.f32 %v1574, %v1558
        %v1591 = vsub.f32 %v1575, %v1559
        %v1592 = vsub.f32 %v1576, %v1560
        %v1593 = vsub.f32 %v1577, %v1561
        %v1594 = vsub.f32 %v1578, %v1562
        %v1595 = vsub.f32 %v1579, %v1563
        %v1596 = vsub.f32 %v1580, %v1564
        %v1597 = vsub.f32 %v1581, %v1565
        %v1598 = vld [vmem:[#allocation2 + $0x20] sm:$0xff]
        %v1599 = vld [vmem:[#allocation2 + $0x28] sm:$0xff]
        %v1600 = vpack.c.bf16 %v1551, %v1550
        %v1601 = vpack.c.bf16 %v1553, %v1552
        %v1602 = vpack.c.bf16 %v1555, %v1554
        %v1603 = vpack.c.bf16 %v1557, %v1556
        %v1604 = vpack.c.bf16 %v1559, %v1558
        %v1605 = vpack.c.bf16 %v1561, %v1560
        %v1606 = vpack.c.bf16 %v1563, %v1562
        %v1607 = vpack.c.bf16 %v1565, %v1564
        %1608 = vmatprep.subr.bf16.mxu0 0
        %1609 = vmatpush1.bf16.msra.mxu0 %v1600
        %1610 = vmatprep.subr.bf16.mxu0 0
        %1611 = vmatpush1.bf16.msra.mxu0 %v1601
        %1612 = vmatprep.subr.bf16.mxu0 0
        %1613 = vmatpush1.bf16.msra.mxu0 %v1602
        %1614 = vmatprep.subr.bf16.mxu0 0
        %1615 = vmatpush1.bf16.msra.mxu0 %v1603
        %1616 = vmatprep.subr.bf16.mxu0 0
        %1617 = vmatpush1.bf16.msra.mxu0 %v1604
        %1618 = vmatprep.subr.bf16.mxu0 0
        %1619 = vmatpush1.bf16.msra.mxu0 %v1605
        %1620 = vmatprep.subr.bf16.mxu0 0
        %1621 = vmatpush1.bf16.msra.mxu0 %v1606
        %1622 = vmatprep.subr.bf16.mxu0 0
        %1623 = vmatpush1.bf16.msra.mxu0 %v1607
        %1624 = vmatprep.subr.bf16.mxu0 0
        %1625 = vmatpush1.bf16.msra.mxu0 0
        %1626 = vmatprep.subr.bf16.mxu0 0
        %1627 = vmatpush1.bf16.msra.mxu0 0
        %1628 = vmatprep.subr.bf16.mxu0 0
        %1629 = vmatpush1.bf16.msra.mxu0 0
        %1630 = vmatprep.subr.bf16.mxu0 0
        %1631 = vmatpush1.bf16.msra.mxu0 0
        %1632 = vmatprep.subr.bf16.mxu0 0
        %1633 = vmatpush1.bf16.msra.mxu0 0
        %1634 = vmatprep.subr.bf16.mxu0 0
        %1635 = vmatpush1.bf16.msra.mxu0 0
        %1636 = vmatprep.subr.bf16.mxu0 0
        %1637 = vmatpush1.bf16.msra.mxu0 0
        %1638 = vmatprep.subr.bf16.mxu0 0
        %1639 = vmatpush1.bf16.msra.mxu0 0
        %1640 = vmatprep.mubr.bf16.mxu0 0
        %1641 = vmatmul.mubr.bf16.gmra.mrb[0].mxu0 %v1598
        %v1642 = vpop.f32.mrb[0].mxu0
        %v1643 = vadd.f32 0.0, %v1642
        %v1644 = vpop.f32.mrb[0].mxu0
        %v1645 = vpop.f32.mrb[0].mxu0
        %v1646 = vadd.f32 0.0, %v1645
        %v1647 = vpop.f32.mrb[0].mxu0
        %1648 = vdwg.mxu0
        %v1649 = vadd.f32 %v1516, %v1643
        %v1650 = vadd.f32 %v1517, %v1646
        %v1651 = vpack.c.bf16 %v1583, %v1582
        %v1652 = vpack.c.bf16 %v1585, %v1584
        %v1653 = vpack.c.bf16 %v1587, %v1586
        %v1654 = vpack.c.bf16 %v1589, %v1588
        %v1655 = vpack.c.bf16 %v1591, %v1590
        %v1656 = vpack.c.bf16 %v1593, %v1592
        %v1657 = vpack.c.bf16 %v1595, %v1594
        %v1658 = vpack.c.bf16 %v1597, %v1596
        %1659 = vmatprep.subr.bf16.mxu0 0
        %1660 = vmatpush1.bf16.msra.mxu0 %v1651
        %1661 = vmatprep.subr.bf16.mxu0 0
        %1662 = vmatpush1.bf16.msra.mxu0 %v1652
        %1663 = vmatprep.subr.bf16.mxu0 0
        %1664 = vmatpush1.bf16.msra.mxu0 %v1653
        %1665 = vmatprep.subr.bf16.mxu0 0
        %1666 = vmatpush1.bf16.msra.mxu0 %v1654
        %1667 = vmatprep.subr.bf16.mxu0 0
        %1668 = vmatpush1.bf16.msra.mxu0 %v1655
        %1669 = vmatprep.subr.bf16.mxu0 0
        %1670 = vmatpush1.bf16.msra.mxu0 %v1656
        %1671 = vmatprep.subr.bf16.mxu0 0
        %1672 = vmatpush1.bf16.msra.mxu0 %v1657
        %1673 = vmatprep.subr.bf16.mxu0 0
        %1674 = vmatpush1.bf16.msra.mxu0 %v1658
        %1675 = vmatprep.subr.bf16.mxu0 0
        %1676 = vmatpush1.bf16.msra.mxu0 0
        %1677 = vmatprep.subr.bf16.mxu0 0
        %1678 = vmatpush1.bf16.msra.mxu0 0
        %1679 = vmatprep.subr.bf16.mxu0 0
        %1680 = vmatpush1.bf16.msra.mxu0 0
        %1681 = vmatprep.subr.bf16.mxu0 0
        %1682 = vmatpush1.bf16.msra.mxu0 0
        %1683 = vmatprep.subr.bf16.mxu0 0
        %1684 = vmatpush1.bf16.msra.mxu0 0
        %1685 = vmatprep.subr.bf16.mxu0 0
        %1686 = vmatpush1.bf16.msra.mxu0 0
        %1687 = vmatprep.subr.bf16.mxu0 0
        %1688 = vmatpush1.bf16.msra.mxu0 0
        %1689 = vmatprep.subr.bf16.mxu0 0
        %1690 = vmatpush1.bf16.msra.mxu0 0
        %1691 = vmatprep.mubr.bf16.mxu0 0
        %1692 = vmatmul.mubr.bf16.gmra.mrb[0].mxu0 %v1599
        %v1693 = vpop.f32.mrb[0].mxu0
        %v1694 = vadd.f32 0.0, %v1693
        %v1695 = vpop.f32.mrb[0].mxu0
        %v1696 = vpop.f32.mrb[0].mxu0
        %v1697 = vadd.f32 0.0, %v1696
        %v1698 = vpop.f32.mrb[0].mxu0
        %1699 = vdwg.mxu0
        %v1700 = vadd.f32 %v1649, %v1694
        %v1701 = vadd.f32 %v1650, %v1697
        %v1702 = vld [vmem:[%s7] sm:$0xff]
        %v1703 = vld [vmem:[%s7 + $0x8] sm:$0xff]
        %1705 = vset.pattern.permute.xlu0 0
        %1706 = vperm.xlu0 %1705, %v1702
        %v1707 = vpop.permute.xlu0 %1706
        %1710 = vset.pattern.permute.xlu0 0
        %1711 = vperm.xlu0 %1710, %v1703
        %v1712 = vpop.permute.xlu0 %1711
        %v1714 = vadd.f32 %v1700, %v1707
        %v1715 = vadd.f32 %v1701, %v1712
        %v1716 = vmax.f32 %v1714, 0.0
        %v1717 = vmax.f32 %v1715, 0.0
        %v1718 = vld [vmem:[%s6] sm:$0xf]
        %v1719 = vld [vmem:[%s6 + $0x4] sm:$0xf]
        %v1720 = vld [vmem:[%s6 + $0x8] sm:$0xf]
        %v1721 = vld [vmem:[%s6 + $0xc] sm:$0xf]
        %v1722 = vpack.c.bf16 %v1717, %v1716
        %v1727 = vunpack.c.l.b16 %v1718
        %v1728 = vunpack.c.l.b16 %v1719
        %v1729 = vunpack.c.l.b16 %v1720
        %v1730 = vunpack.c.l.b16 %v1721
        %v1731 = vpack.c.b16 %v1728, %v1727
        %v1732 = vpack.c.b16 %v1730, %v1729
        %vm1733 = vcmask 130048
        %v1735 = vsel %vm1733, %v1731, 0
        %v1738 = vsel %vm1733, %v1732, 0
        %1740 = vmatprep.subr.bf16.mxu0 0
        %1741 = vmatpush1.bf16.msra.mxu0 %v1722
        %1742 = vmatprep.subr.bf16.mxu0 0
        %1743 = vmatpush1.bf16.msra.mxu0 0
        %1744 = vmatprep.subr.bf16.mxu0 0
        %1745 = vmatpush1.bf16.msra.mxu0 0
        %1746 = vmatprep.subr.bf16.mxu0 0
        %1747 = vmatpush1.bf16.msra.mxu0 0
        %1748 = vmatprep.subr.bf16.mxu0 0
        %1749 = vmatpush1.bf16.msra.mxu0 0
        %1750 = vmatprep.subr.bf16.mxu0 0
        %1751 = vmatpush1.bf16.msra.mxu0 0
        %1752 = vmatprep.subr.bf16.mxu0 0
        %1753 = vmatpush1.bf16.msra.mxu0 0
        %1754 = vmatprep.subr.bf16.mxu0 0
        %1755 = vmatpush1.bf16.msra.mxu0 0
        %1756 = vmatprep.subr.bf16.mxu0 0
        %1757 = vmatpush1.bf16.msra.mxu0 0
        %1758 = vmatprep.subr.bf16.mxu0 0
        %1759 = vmatpush1.bf16.msra.mxu0 0
        %1760 = vmatprep.subr.bf16.mxu0 0
        %1761 = vmatpush1.bf16.msra.mxu0 0
        %1762 = vmatprep.subr.bf16.mxu0 0
        %1763 = vmatpush1.bf16.msra.mxu0 0
        %1764 = vmatprep.subr.bf16.mxu0 0
        %1765 = vmatpush1.bf16.msra.mxu0 0
        %1766 = vmatprep.subr.bf16.mxu0 0
        %1767 = vmatpush1.bf16.msra.mxu0 0
        %1768 = vmatprep.subr.bf16.mxu0 0
        %1769 = vmatpush1.bf16.msra.mxu0 0
        %1770 = vmatprep.subr.bf16.mxu0 0
        %1771 = vmatpush1.bf16.msra.mxu0 0
        %1772 = vmatprep.mubr.bf16.mxu0 0
        %1773 = vmatmul.mubr.bf16.gmra.mrb[0].mxu0 %v1735
        %v1774 = vpop.f32.mrb[0].mxu0
        %v1775 = vadd.f32 0.0, %v1774
        %v1776 = vpop.f32.mrb[0].mxu0
        %v1777 = vpop.f32.mrb[0].mxu0
        %v1778 = vadd.f32 0.0, %v1777
        %v1779 = vpop.f32.mrb[0].mxu0
        %1780 = vmatprep.mubr.bf16.mxu0 0
        %1781 = vmatmul.mubr.bf16.gmra.mrb[0].mxu0 %v1738
        %v1782 = vpop.f32.mrb[0].mxu0
        %v1783 = vadd.f32 0.0, %v1782
        %v1784 = vpop.f32.mrb[0].mxu0
        %v1785 = vpop.f32.mrb[0].mxu0
        %v1786 = vadd.f32 0.0, %v1785
        %v1787 = vpop.f32.mrb[0].mxu0
        %1788 = vdwg.mxu0
        %v1793 = vunpack.c.l.b16 %v634
        %v1794 = vunpack.c.l.b16 %v635
        %v1795 = vunpack.c.l.b16 %v636
        %v1796 = vunpack.c.l.b16 %v637
        %v1797 = vpack.c.b16 %v1794, %v1793
        %v1798 = vpack.c.b16 %v1796, %v1795
        %v1801 = vunpack.c.l.b16 %v632
        %v1802 = vunpack.c.l.b16 %v633
        %v1803 = vpack.c.b16 %v1802, %v1801
        %v1806 = vsel %vm1733, %v1797, 0
        %v1809 = vsel %vm1733, %v1798, 0
        %1811 = vmatprep.subr.bf16.mxu0 0
        %1812 = vmatpush1.bf16.msra.mxu0 %v1803
        %1813 = vmatprep.subr.bf16.mxu0 0
        %1814 = vmatpush1.bf16.msra.mxu0 0
        %1815 = vmatprep.subr.bf16.mxu0 0
        %1816 = vmatpush1.bf16.msra.mxu0 0
        %1817 = vmatprep.subr.bf16.mxu0 0
        %1818 = vmatpush1.bf16.msra.mxu0 0
        %1819 = vmatprep.subr.bf16.mxu0 0
        %1820 = vmatpush1.bf16.msra.mxu0 0
        %1821 = vmatprep.subr.bf16.mxu0 0
        %1822 = vmatpush1.bf16.msra.mxu0 0
        %1823 = vmatprep.subr.bf16.mxu0 0
        %1824 = vmatpush1.bf16.msra.mxu0 0
        %1825 = vmatprep.subr.bf16.mxu0 0
        %1826 = vmatpush1.bf16.msra.mxu0 0
        %1827 = vmatprep.subr.bf16.mxu0 0
        %1828 = vmatpush1.bf16.msra.mxu0 0
        %1829 = vmatprep.subr.bf16.mxu0 0
        %1830 = vmatpush1.bf16.msra.mxu0 0
        %1831 = vmatprep.subr.bf16.mxu0 0
        %1832 = vmatpush1.bf16.msra.mxu0 0
        %1833 = vmatprep.subr.bf16.mxu0 0
        %1834 = vmatpush1.bf16.msra.mxu0 0
        %1835 = vmatprep.subr.bf16.mxu0 0
        %1836 = vmatpush1.bf16.msra.mxu0 0
        %1837 = vmatprep.subr.bf16.mxu0 0
        %1838 = vmatpush1.bf16.msra.mxu0 0
        %1839 = vmatprep.subr.bf16.mxu0 0
        %1840 = vmatpush1.bf16.msra.mxu0 0
        %1841 = vmatprep.subr.bf16.mxu0 0
        %1842 = vmatpush1.bf16.msra.mxu0 0
        %1843 = vmatprep.mubr.bf16.mxu0 0
        %1844 = vmatmul.mubr.bf16.gmra.mrb[0].mxu0 %v1806
        %v1845 = vpop.f32.mrb[0].mxu0
        %v1846 = vadd.f32 %v1775, %v1845
        %v1847 = vpop.f32.mrb[0].mxu0
        %v1848 = vpop.f32.mrb[0].mxu0
        %v1849 = vadd.f32 %v1778, %v1848
        %v1850 = vpop.f32.mrb[0].mxu0
        %1851 = vmatprep.mubr.bf16.mxu0 0
        %1852 = vmatmul.mubr.bf16.gmra.mrb[0].mxu0 %v1809
        %v1853 = vpop.f32.mrb[0].mxu0
        %v1854 = vadd.f32 %v1783, %v1853
        %v1855 = vpop.f32.mrb[0].mxu0
        %v1856 = vpop.f32.mrb[0].mxu0
        %v1857 = vadd.f32 %v1786, %v1856
        %v1858 = vpop.f32.mrb[0].mxu0
        %1859 = vdwg.mxu0
        %v1860 = vld [vmem:[%s8] sm:$0xff]
        %v1861 = vld [vmem:[%s8 + $0x8] sm:$0xff]
        %v1862 = vld [vmem:[%s8 + $0x10] sm:$0xff]
        %v1863 = vld [vmem:[%s8 + $0x18] sm:$0xff]
        %1865 = vset.pattern.permute.xlu0 0
        %1866 = vperm.xlu0 %1865, %v1860
        %v1867 = vpop.permute.xlu0 %1866
        %1870 = vset.pattern.permute.xlu0 0
        %1871 = vperm.xlu0 %1870, %v1861
        %v1872 = vpop.permute.xlu0 %1871
        %1875 = vset.pattern.permute.xlu0 0
        %1876 = vperm.xlu0 %1875, %v1862
        %v1877 = vpop.permute.xlu0 %1876
        %1880 = vset.pattern.permute.xlu0 0
        %1881 = vperm.xlu0 %1880, %v1863
        %v1882 = vpop.permute.xlu0 %1881
        %v1884 = vadd.f32 %v1846, %v1867
        %v1885 = vadd.f32 %v1849, %v1872
        %v1886 = vadd.f32 %v1854, %v1877
        %v1887 = vadd.f32 %v1857, %v1882
        %v1888 = vmax.f32 %v1884, 0.0
        %v1889 = vmax.f32 %v1885, 0.0
        %v1890 = vmax.f32 %v1886, 0.0
        %v1891 = vmax.f32 %v1887, 0.0
        %1892 = vst [vmem:[%s375] sm:$0xff] %v1888
        %1893 = vst [vmem:[%s375 + $0x8] sm:$0xff] %v1889
        %1894 = vst [vmem:[%s375 + $0x10] sm:$0xff] %v1890
        %1895 = vst [vmem:[%s375 + $0x18] sm:$0xff] %v1891
        %s1896 = sand.u32 %s251, 1
        %s1897 = scalar_lea.sflag [#allocation4], %s1896
        %s1898 = sand.u32 %s251, 1
        %s1899 = smul.addr %s1898, 32
        %s1900 = scalar_lea.vmem [#allocation3], %s1899
        // Predicated region
        $region61: #{tpu_custom_call.1} parent=55 // pred_check
          %p1901 = pneg %p261
        $region62: #{tpu_custom_call.1} parent=55 // pred_check_branch
          %1903 = sbr.rel (%p1901) target = $region64
        $region63: #{tpu_custom_call.1} parent=55 // pred_region
          %s1905 = ssub.s32 512, 512
          %1906 = vsyncadd %s1897, %s1905
          %s1907 = smul.addr %s27, 4
          %s1908 = sadd.s32 %s28, %s1907
          %s1909 = smul.addr %s1908, 128
          %s1910 = scalar_lea.hbm %s9, %s1909
          %s1911 = sshll.u32 %s1900, 4
          %s1912 = int_to_ptr.vmem [resolvable:$true] %s1911
          %1917 = dma.vmem_to_hbm [thread:$0]  %s1912, 512, %s1910, %s1897, 128, 128, 8
        $region64: #{tpu_custom_call.1} parent=55 // pred_fallthru
          _
      $region56: #{tpu_custom_call.1} parent=5 // pred_fallthru
        _
      %p1918 = scmp.le.s32.totalorder 2, %s18
      // Predicated region
      $region65: #{tpu_custom_call.1} parent=5 // pred_check
        %p1919 = pneg %p1918
      $region66: #{tpu_custom_call.1} parent=5 // pred_check_branch
        %1921 = sbr.rel (%p1919) target = $region68
      $region67: #{tpu_custom_call.1} parent=5 // pred_region
        %s1922 = ssub.s32 %s18, 2
        // Predicated region
        $region69: #{tpu_custom_call.1} parent=67 // pred_check
          %p1923 = pneg %p267
        $region70: #{tpu_custom_call.1} parent=67 // pred_check_branch
          %1925 = sbr.rel (%p1923) target = $region72
        $region71: #{tpu_custom_call.1} parent=67 // pred_region
          %s1926 = sand.u32 %s252, 1
          %s1927 = scalar_lea.sflag [#allocation4], %s1926
          %s1928 = sand.u32 %s252, 1
          %s1929 = smul.addr %s1928, 32
          %s1930 = scalar_lea.vmem [#allocation3], %s1929
          %1931 = dma.done %s1927, 512
        $region72: #{tpu_custom_call.1} parent=67 // pred_fallthru
          _
      $region68: #{tpu_custom_call.1} parent=5 // pred_fallthru
        _
    $region6: #{tpu_custom_call.1} parent=1 // loop_footer
      %s22 = sadd.s32 1, %s18
    $region7: #{tpu_custom_call.1} parent=1 // loop_footer_branch
      %17 = sbr.rel target = $region3
    $region8: #{tpu_custom_call.1} parent=1 // loop_exit
      _
    %1932 = vsyncpa [#allocation4], 1
    %s1933 = scalar_lea.sflag [#allocation4], 1
    %1934 = vsyncpa %s1933, 1

</llo_original>
